<compile_context>
chip_gen: v6e
topology: v6e:2x2x1
jax: 0.10.0
libtpu: 0.0.40
codegen_flags: <defaults>
</compile_context>

<pallas_src>
import functools

import numpy as np
import jax
import jax.numpy as jnp
from jax.experimental import pallas as pl
from jax.experimental.pallas import tpu as pltpu


# ----------------------------------------------------------------------------
# Constant tables (built once in numpy, passed to the kernel as inputs).
# ----------------------------------------------------------------------------
def build_tables(n_qubits):
    """Sign vectors, composed entangling permutation, and PauliZ eigenvalue
    table.  Wire 0 = most significant bit."""
    D = 1 << n_qubits

    def bit(s, q):
        return (s >> (n_qubits - 1 - q)) & 1

    sgn = np.zeros((n_qubits, D), np.float32)       # -1 if bit_q==0 else +1
    zvec = np.zeros((D, n_qubits), np.float32)      # PauliZ eigenvalue 1-2*bit
    for q in range(n_qubits):
        for s in range(D):
            sgn[q, s] = 1.0 if bit(s, q) else -1.0
            zvec[s, q] = 1.0 - 2.0 * bit(s, q)

    def cnot_perm(c, t):
        m = np.zeros((D, D), np.float32)
        for s in range(D):
            j = s ^ (1 << (n_qubits - 1 - t)) if bit(s, c) else s
            m[j, s] = 1.0
        return m

    # Composed entangling block: CNOT(q,q+1) for q=0..Q-2, then CNOT(Q-1,0).
    pent = np.eye(D, dtype=np.float32)
    cnots = [(q, q + 1) for q in range(n_qubits - 1)]
    if n_qubits > 2:
        cnots.append((n_qubits - 1, 0))
    for (c, t) in cnots:
        pent = pent @ cnot_perm(c, t)   # row-vector convention: a' = a @ P1 @ P2 ...
    return sgn, pent.astype(np.float32), zvec


# ----------------------------------------------------------------------------
# Pallas kernel: lane-packed statevector simulation + fused readout.
# ----------------------------------------------------------------------------
def quantum_embedding_kernel(ang_ref, signs_ref, pent2_ref, zw2_ref, b_ref,
                             out_ref, *, n_layers, n_qubits):
    f32 = jnp.float32
    T = ang_ref.shape[0]
    LQ = n_layers * n_qubits
    D = 1 << n_qubits
    D2 = 2 * D                        # packed lane width: [ re | im ]

    # |00...0> initial state for every token: lane 0 (re of state 0) = 1.
    lane = jax.lax.broadcasted_iota(jnp.int32, (T, D2), 1)
    cat = jnp.where(lane == 0, 1.0, 0.0).astype(f32)

    # Half-angle trig for all rotations (theta cols [0,LQ), phi cols [LQ,2LQ)),
    # done once per tile (EUP work).
    half = 0.5 * ang_ref[...]
    c_all = jnp.cos(half)
    s_all = jnp.sin(half)

    # Hoisted per-qubit sign rows / select masks ((1, 2D) each):
    #   ry_rows[q] = [ sgn | sgn ]   (RY flip-term sign)
    #   rz_rows[q] = [-sgn | +sgn]   (RZ cross-term sign after the half-swap)
    ry_rows = [signs_ref[q:q + 1, :] for q in range(n_qubits)]
    rz_rows = [signs_ref[n_qubits + q:n_qubits + q + 1, :]
               for q in range(n_qubits)]
    bit0 = [ry_rows[q] < 0.0 for q in range(n_qubits)]

    if n_layers > 1 and n_qubits > 1:
        pent2 = pent2_ref[...]        # resident table, read from VMEM once

    for layer in range(n_layers):
        for q in range(n_qubits):
            col = layer * n_qubits + q
            c_t = c_all[:, col:col + 1]            # (T, 1)
            s_t = s_all[:, col:col + 1]
            c_p = c_all[:, LQ + col:LQ + col + 1]
            s_p = s_all[:, LQ + col:LQ + col + 1]
            stride = 1 << (n_qubits - 1 - q)

            # Bit-flip partner amplitudes (re & im halves at once) via XLU
            # lane rolls + select.  Selected lanes never cross the re/im
            # boundary, so wrap-around lanes are never picked.
            cat_f = jnp.where(bit0[q],
                              pltpu.roll(cat, D2 - stride, axis=1),
                              pltpu.roll(cat, stride, axis=1))
            # RY(theta): new = cos*old + sgn*sin*old[flip]   (same for re & im)
            cat1 = c_t * cat + (s_t * ry_rows[q]) * cat_f
            # RZ(phi):  re' = cp*re - sgn*sp*im ; im' = cp*im + sgn*sp*re
            # Half-swap roll supplies the cross term, rz_rows its sign.
            cat = c_p * cat1 + (s_p * rz_rows[q]) * pltpu.roll(cat1, D, axis=1)

        if layer < n_layers - 1 and n_qubits > 1:
            # Entangling permutation on both halves: one 128-wide MXU matmul
            # against block_diag(pent, pent).
            cat = jnp.dot(cat, pent2, preferred_element_type=f32)

    # Fused readout: (re^2 + im^2) @ (zvec @ W^T) + b  ==  (cat*cat) @ [zw;zw] + b
    out_ref[...] = (jnp.dot(cat * cat, zw2_ref[...], preferred_element_type=f32)
                    + b_ref[...])


# ----------------------------------------------------------------------------
# Wrapper (glue: embedding gather, table prep, tiling, pallas_call plumbing).
# ----------------------------------------------------------------------------
def quantum_embedding_forward(token_ids, quantum_params, w, b,
                              *, n_layers, n_qubits):
    B, S = token_ids.shape
    T = B * S
    E = w.shape[0]
    D = 1 << n_qubits
    D2 = 2 * D
    LQ = n_layers * n_qubits
    E_PAD = 128                       # lane-dense output slab

    sgn_np, pent_np, zvec_np = build_tables(n_qubits)

    # Packed-layout sign tables: rows [0,Q) = [sgn|sgn], rows [Q,2Q) = [-sgn|+sgn].
    signs_np = np.zeros((2 * n_qubits, D2), np.float32)
    signs_np[:n_qubits, :D] = sgn_np
    signs_np[:n_qubits, D:] = sgn_np
    signs_np[n_qubits:, :D] = -sgn_np
    signs_np[n_qubits:, D:] = sgn_np
    signs = jnp.asarray(signs_np)

    # block_diag(pent, pent) for the packed entangling matmul.
    pent2_np = np.zeros((D2, D2), np.float32)
    pent2_np[:D, :D] = pent_np
    pent2_np[D:, D:] = pent_np
    pent2 = jnp.asarray(pent2_np)

    # Fused readout weights (offline): zw = zvec @ W^T padded to 128 lanes and
    # stacked twice along rows so (cat*cat) @ zw2 == (re^2+im^2) @ zw.
    zw = jnp.dot(jnp.asarray(zvec_np), jnp.transpose(w).astype(jnp.float32))  # (D, E)
    zw_pad = jnp.zeros((D, E_PAD), jnp.float32).at[:, :E].set(zw)
    zw2 = jnp.concatenate([zw_pad, zw_pad], axis=0)                            # (2D, E_PAD)
    b_pad = jnp.zeros((1, E_PAD), jnp.float32).at[:, :E].set(
        b.astype(jnp.float32).reshape(1, E))

    # Embedding-table gather + merged angle layout (glue, plain JAX):
    # cols [0,LQ) = theta, cols [LQ,2LQ) = phi.
    p = quantum_params[token_ids.reshape(-1)].astype(jnp.float32)   # (T, L, Q, 2)
    theta = p[..., 0].reshape(T, LQ)
    phi = p[..., 1].reshape(T, LQ)
    ang = jnp.concatenate([theta, phi], axis=1)                     # (T, 2*LQ)

    def rnd_up(x, m):
        return ((x + m - 1) // m) * m

    # Token-axis tiling: big tiles for large T (amortize ~0.35us per grid step),
    # and for small T split into >=2 tiles so both v7x TensorCores get work.
    if T >= 1024:
        TILE_T = 512
    elif T >= 512:
        TILE_T = 256
    elif T >= 256:
        TILE_T = 128
    else:
        TILE_T = rnd_up(max((T + 1) // 2, 8), 8)
    T_pad = rnd_up(T, TILE_T)
    if T_pad != T:
        ang = jnp.pad(ang, ((0, T_pad - T), (0, 0)))
    num_tiles = T_pad // TILE_T

    kernel = functools.partial(quantum_embedding_kernel,
                               n_layers=n_layers, n_qubits=n_qubits)

    # Advisory cost hint for the XLA scheduler.
    flops = int(2 * T_pad * D2 * D2 * max(n_layers - 1, 0)   # entangling matmuls
                + 2 * T_pad * D2 * E_PAD                      # fused readout
                + 9 * LQ * T_pad * D2)                        # gate VPU work
    transcendentals = int(2 * T_pad * 2 * LQ)
    bytes_accessed = int(4 * (T_pad * 2 * LQ + 2 * n_qubits * D2 + D2 * D2
                              + D2 * E_PAD + E_PAD + T_pad * E_PAD))

    out = pl.pallas_call(
        kernel,
        grid=(num_tiles,),
        in_specs=[
            pl.BlockSpec((TILE_T, 2 * LQ), lambda i: (i, 0)),     # angles
            pl.BlockSpec((2 * n_qubits, D2), lambda i: (0, 0)),   # sign rows (resident)
            pl.BlockSpec((D2, D2), lambda i: (0, 0)),             # block-diag pent
            pl.BlockSpec((D2, E_PAD), lambda i: (0, 0)),          # stacked zw
            pl.BlockSpec((1, E_PAD), lambda i: (0, 0)),           # bias
        ],
        out_specs=pl.BlockSpec((TILE_T, E_PAD), lambda i: (i, 0)),
        out_shape=jax.ShapeDtypeStruct((T_pad, E_PAD), jnp.float32),
        compiler_params=pltpu.CompilerParams(
            dimension_semantics=("parallel",)),
        cost_estimate=pl.CostEstimate(flops=flops,
                                      transcendentals=transcendentals,
                                      bytes_accessed=bytes_accessed),
    )(ang, signs, pent2, zw2, b_pad)
    return out[:T, :E].reshape(B, S, E)


# ----------------------------------------------------------------------------
# Independent numpy reference (full Kronecker-product statevector sim).
# ----------------------------------------------------------------------------
def numpy_reference(token_ids, qparams, w, b, n_qubits, n_layers):
    D = 1 << n_qubits
    I2 = np.eye(2, dtype=complex)

    def embed(g, q):
        m = np.array([[1.0]], dtype=complex)
        for wire in range(n_qubits):
            m = np.kron(m, g if wire == q else I2)
        return m

    def ry(t):
        c, s = np.cos(t / 2.0), np.sin(t / 2.0)
        return np.array([[c, -s], [s, c]], dtype=complex)

    def rz(p):
        return np.diag([np.exp(-0.5j * p), np.exp(0.5j * p)])

    def cnot(c, t):
        m = np.zeros((D, D), dtype=complex)
        for s in range(D):
            if (s >> (n_qubits - 1 - c)) & 1:
                j = s ^ (1 << (n_qubits - 1 - t))
            else:
                j = s
            m[j, s] = 1.0
        return m

    zeig = np.array([[1.0 - 2.0 * ((s >> (n_qubits - 1 - q)) & 1)
                      for q in range(n_qubits)] for s in range(D)])

    B, S = token_ids.shape
    out = np.zeros((B, S, w.shape[0]), dtype=np.float64)
    for bi in range(B):
        for si in range(S):
            params = qparams[token_ids[bi, si]].astype(np.float64)
            psi = np.zeros(D, dtype=complex)
            psi[0] = 1.0
            for layer in range(n_layers):
                for q in range(n_qubits):
                    psi = embed(ry(params[layer, q, 0]), q) @ psi
                    psi = embed(rz(params[layer, q, 1]), q) @ psi
                if layer < n_layers - 1:
                    for q in range(n_qubits - 1):
                        psi = cnot(q, q + 1) @ psi
                    if n_qubits > 2:
                        psi = cnot(n_qubits - 1, 0) @ psi
            probs = np.abs(psi) ** 2
            ev = probs @ zeig                       # (n_qubits,)
            out[bi, si] = ev @ w.T.astype(np.float64) + b.astype(np.float64)
    return out.astype(np.float32)


# ----------------------------------------------------------------------------
if __name__ == "__main__":
    vocab_size, embedding_dim = 32, 8
    n_qubits, n_layers = 6, 3
    B, S = 2, 8

    key = jax.random.PRNGKey(0)
    k1, k2, k3, k4 = jax.random.split(key, 4)
    quantum_params = 0.1 * jax.random.normal(
        k1, (vocab_size, n_layers, n_qubits, 2), jnp.float32)
    bound = 1.0 / np.sqrt(n_qubits)
    w = jax.random.uniform(k2, (embedding_dim, n_qubits), jnp.float32,
                           -bound, bound)
    b = jax.random.uniform(k3, (embedding_dim,), jnp.float32, -bound, bound)
    token_ids = jax.random.randint(k4, (B, S), 0, vocab_size)

    out = quantum_embedding_forward(token_ids, quantum_params, w, b,
                                    n_layers=n_layers, n_qubits=n_qubits)
    out = jax.block_until_ready(out)
    assert out.shape == (B, S, embedding_dim)

    ref = numpy_reference(np.asarray(token_ids), np.asarray(quantum_params),
                          np.asarray(w), np.asarray(b), n_qubits, n_layers)
    np.testing.assert_allclose(np.asarray(out), ref, rtol=1e-3, atol=1e-4)

    print("KERNEL_OK")
</pallas_src>

<mosaic_0001>
module attributes {stable_mosaic.version = 11 : i64} {
  func.func @quantum_embedding_kernel(%arg0: i32, %arg1: memref<8x36xf32, #tpu.memory_space<vmem>>, %arg2: memref<12x128xf32, #tpu.memory_space<vmem>>, %arg3: memref<128x128xf32, #tpu.memory_space<vmem>>, %arg4: memref<128x128xf32, #tpu.memory_space<vmem>>, %arg5: memref<1x128xf32, #tpu.memory_space<vmem>>, %arg6: memref<8x128xf32, #tpu.memory_space<vmem>>) attributes {dimension_semantics = [#tpu.dimension_semantics<parallel>], iteration_bounds = array<i64: 2>, scalar_prefetch = 0 : i64, scratch_operands = 0 : i64, tpu.core_type = #tpu.core_type<tc>, window_params = [{transform_indices = @transform_0, window_bounds = array<i64: 8, 36>}, {pipeline_mode = #tpu.pipeline_mode<synchronous>, transform_indices = @transform_1, window_bounds = array<i64: 12, 128>}, {pipeline_mode = #tpu.pipeline_mode<synchronous>, transform_indices = @transform_2, window_bounds = array<i64: 128, 128>}, {pipeline_mode = #tpu.pipeline_mode<synchronous>, transform_indices = @transform_3, window_bounds = array<i64: 128, 128>}, {pipeline_mode = #tpu.pipeline_mode<synchronous>, transform_indices = @transform_4, window_bounds = array<i64: 1, 128>}, {transform_indices = @transform_5, window_bounds = array<i64: 8, 128>}]} {
    %0 = tpu.iota {dimensions = array<i32: 1>} : vector<8x128xi32>
    %c0_i32 = arith.constant 0 : i32
    %1 = vector.broadcast %c0_i32 : i32 to vector<8x128xi32>
    %2 = arith.cmpi eq, %0, %1 : vector<8x128xi32>
    %cst = arith.constant 1.000000e+00 : f32
    %cst_0 = arith.constant 0.000000e+00 : f32
    %3 = vector.broadcast %cst : f32 to vector<8x128xf32>
    %4 = vector.broadcast %cst_0 : f32 to vector<8x128xf32>
    %5 = arith.select %2, %3, %4 : vector<8x128xi1>, vector<8x128xf32>
    %c0 = arith.constant 0 : index
    %c0_1 = arith.constant 0 : index
    %6 = vector.load %arg1[%c0, %c0_1] : memref<8x36xf32, #tpu.memory_space<vmem>>, vector<8x36xf32>
    %cst_2 = arith.constant 5.000000e-01 : f32
    %7 = vector.broadcast %cst_2 : f32 to vector<8x36xf32>
    %8 = arith.mulf %7, %6 : vector<8x36xf32>
    %9 = math.cos %8 : vector<8x36xf32>
    %10 = math.sin %8 : vector<8x36xf32>
    %c0_3 = arith.constant 0 : index
    %c0_4 = arith.constant 0 : index
    %11 = vector.load %arg2[%c0_3, %c0_4] : memref<12x128xf32, #tpu.memory_space<vmem>>, vector<1x128xf32>
    %c1 = arith.constant 1 : index
    %c0_5 = arith.constant 0 : index
    %12 = vector.load %arg2[%c1, %c0_5] : memref<12x128xf32, #tpu.memory_space<vmem>>, vector<1x128xf32>
    %c2 = arith.constant 2 : index
    %c0_6 = arith.constant 0 : index
    %13 = vector.load %arg2[%c2, %c0_6] : memref<12x128xf32, #tpu.memory_space<vmem>>, vector<1x128xf32>
    %c3 = arith.constant 3 : index
    %c0_7 = arith.constant 0 : index
    %14 = vector.load %arg2[%c3, %c0_7] : memref<12x128xf32, #tpu.memory_space<vmem>>, vector<1x128xf32>
    %c4 = arith.constant 4 : index
    %c0_8 = arith.constant 0 : index
    %15 = vector.load %arg2[%c4, %c0_8] : memref<12x128xf32, #tpu.memory_space<vmem>>, vector<1x128xf32>
    %c5 = arith.constant 5 : index
    %c0_9 = arith.constant 0 : index
    %16 = vector.load %arg2[%c5, %c0_9] : memref<12x128xf32, #tpu.memory_space<vmem>>, vector<1x128xf32>
    %c6 = arith.constant 6 : index
    %c0_10 = arith.constant 0 : index
    %17 = vector.load %arg2[%c6, %c0_10] : memref<12x128xf32, #tpu.memory_space<vmem>>, vector<1x128xf32>
    %c7 = arith.constant 7 : index
    %c0_11 = arith.constant 0 : index
    %18 = vector.load %arg2[%c7, %c0_11] : memref<12x128xf32, #tpu.memory_space<vmem>>, vector<1x128xf32>
    %c8 = arith.constant 8 : index
    %c0_12 = arith.constant 0 : index
    %19 = vector.load %arg2[%c8, %c0_12] : memref<12x128xf32, #tpu.memory_space<vmem>>, vector<1x128xf32>
    %c9 = arith.constant 9 : index
    %c0_13 = arith.constant 0 : index
    %20 = vector.load %arg2[%c9, %c0_13] : memref<12x128xf32, #tpu.memory_space<vmem>>, vector<1x128xf32>
    %c10 = arith.constant 10 : index
    %c0_14 = arith.constant 0 : index
    %21 = vector.load %arg2[%c10, %c0_14] : memref<12x128xf32, #tpu.memory_space<vmem>>, vector<1x128xf32>
    %c11 = arith.constant 11 : index
    %c0_15 = arith.constant 0 : index
    %22 = vector.load %arg2[%c11, %c0_15] : memref<12x128xf32, #tpu.memory_space<vmem>>, vector<1x128xf32>
    %cst_16 = arith.constant 0.000000e+00 : f32
    %23 = vector.broadcast %cst_16 : f32 to vector<1x128xf32>
    %24 = arith.cmpf olt, %11, %23 : vector<1x128xf32>
    %cst_17 = arith.constant 0.000000e+00 : f32
    %25 = vector.broadcast %cst_17 : f32 to vector<1x128xf32>
    %26 = arith.cmpf olt, %12, %25 : vector<1x128xf32>
    %cst_18 = arith.constant 0.000000e+00 : f32
    %27 = vector.broadcast %cst_18 : f32 to vector<1x128xf32>
    %28 = arith.cmpf olt, %13, %27 : vector<1x128xf32>
    %cst_19 = arith.constant 0.000000e+00 : f32
    %29 = vector.broadcast %cst_19 : f32 to vector<1x128xf32>
    %30 = arith.cmpf olt, %14, %29 : vector<1x128xf32>
    %cst_20 = arith.constant 0.000000e+00 : f32
    %31 = vector.broadcast %cst_20 : f32 to vector<1x128xf32>
    %32 = arith.cmpf olt, %15, %31 : vector<1x128xf32>
    %cst_21 = arith.constant 0.000000e+00 : f32
    %33 = vector.broadcast %cst_21 : f32 to vector<1x128xf32>
    %34 = arith.cmpf olt, %16, %33 : vector<1x128xf32>
    %c0_22 = arith.constant 0 : index
    %c0_23 = arith.constant 0 : index
    %35 = vector.load %arg3[%c0_22, %c0_23] : memref<128x128xf32, #tpu.memory_space<vmem>>, vector<128x128xf32>
    %36 = vector.extract_strided_slice %9 {offsets = [0, 0], sizes = [8, 1], strides = [1, 1]} : vector<8x36xf32> to vector<8x1xf32>
    %37 = vector.extract_strided_slice %10 {offsets = [0, 0], sizes = [8, 1], strides = [1, 1]} : vector<8x36xf32> to vector<8x1xf32>
    %38 = vector.extract_strided_slice %9 {offsets = [0, 18], sizes = [8, 1], strides = [1, 1]} : vector<8x36xf32> to vector<8x1xf32>
    %39 = vector.extract_strided_slice %10 {offsets = [0, 18], sizes = [8, 1], strides = [1, 1]} : vector<8x36xf32> to vector<8x1xf32>
    %c96_i32 = arith.constant 96 : i32
    %40 = tpu.dynamic_rotate %5 by %c96_i32 dim 1 : vector<8x128xf32>, i32 -> vector<8x128xf32>
    %c32_i32 = arith.constant 32 : i32
    %41 = tpu.dynamic_rotate %5 by %c32_i32 dim 1 : vector<8x128xf32>, i32 -> vector<8x128xf32>
    %42 = vector.shape_cast %24 : vector<1x128xi1> to vector<1x128xi1>
    %43 = vector.broadcast %42 : vector<1x128xi1> to vector<8x128xi1>
    %44 = arith.select %43, %40, %41 : vector<8x128xi1>, vector<8x128xf32>
    %45 = vector.broadcast %36 : vector<8x1xf32> to vector<8x128xf32>
    %46 = arith.mulf %45, %5 : vector<8x128xf32>
    %47 = vector.broadcast %37 : vector<8x1xf32> to vector<8x128xf32>
    %48 = vector.broadcast %11 : vector<1x128xf32> to vector<8x128xf32>
    %49 = arith.mulf %47, %48 : vector<8x128xf32>
    %50 = arith.mulf %49, %44 : vector<8x128xf32>
    %51 = arith.addf %46, %50 : vector<8x128xf32>
    %52 = vector.broadcast %38 : vector<8x1xf32> to vector<8x128xf32>
    %53 = arith.mulf %52, %51 : vector<8x128xf32>
    %54 = vector.broadcast %39 : vector<8x1xf32> to vector<8x128xf32>
    %55 = vector.broadcast %17 : vector<1x128xf32> to vector<8x128xf32>
    %56 = arith.mulf %54, %55 : vector<8x128xf32>
    %c64_i32 = arith.constant 64 : i32
    %57 = tpu.dynamic_rotate %51 by %c64_i32 dim 1 : vector<8x128xf32>, i32 -> vector<8x128xf32>
    %58 = arith.mulf %56, %57 : vector<8x128xf32>
    %59 = arith.addf %53, %58 : vector<8x128xf32>
    %60 = vector.extract_strided_slice %9 {offsets = [0, 1], sizes = [8, 1], strides = [1, 1]} : vector<8x36xf32> to vector<8x1xf32>
    %61 = vector.extract_strided_slice %10 {offsets = [0, 1], sizes = [8, 1], strides = [1, 1]} : vector<8x36xf32> to vector<8x1xf32>
    %62 = vector.extract_strided_slice %9 {offsets = [0, 19], sizes = [8, 1], strides = [1, 1]} : vector<8x36xf32> to vector<8x1xf32>
    %63 = vector.extract_strided_slice %10 {offsets = [0, 19], sizes = [8, 1], strides = [1, 1]} : vector<8x36xf32> to vector<8x1xf32>
    %c112_i32 = arith.constant 112 : i32
    %64 = tpu.dynamic_rotate %59 by %c112_i32 dim 1 : vector<8x128xf32>, i32 -> vector<8x128xf32>
    %c16_i32 = arith.constant 16 : i32
    %65 = tpu.dynamic_rotate %59 by %c16_i32 dim 1 : vector<8x128xf32>, i32 -> vector<8x128xf32>
    %66 = vector.shape_cast %26 : vector<1x128xi1> to vector<1x128xi1>
    %67 = vector.broadcast %66 : vector<1x128xi1> to vector<8x128xi1>
    %68 = arith.select %67, %64, %65 : vector<8x128xi1>, vector<8x128xf32>
    %69 = vector.broadcast %60 : vector<8x1xf32> to vector<8x128xf32>
    %70 = arith.mulf %69, %59 : vector<8x128xf32>
    %71 = vector.broadcast %61 : vector<8x1xf32> to vector<8x128xf32>
    %72 = vector.broadcast %12 : vector<1x128xf32> to vector<8x128xf32>
    %73 = arith.mulf %71, %72 : vector<8x128xf32>
    %74 = arith.mulf %73, %68 : vector<8x128xf32>
    %75 = arith.addf %70, %74 : vector<8x128xf32>
    %76 = vector.broadcast %62 : vector<8x1xf32> to vector<8x128xf32>
    %77 = arith.mulf %76, %75 : vector<8x128xf32>
    %78 = vector.broadcast %63 : vector<8x1xf32> to vector<8x128xf32>
    %79 = vector.broadcast %18 : vector<1x128xf32> to vector<8x128xf32>
    %80 = arith.mulf %78, %79 : vector<8x128xf32>
    %c64_i32_24 = arith.constant 64 : i32
    %81 = tpu.dynamic_rotate %75 by %c64_i32_24 dim 1 : vector<8x128xf32>, i32 -> vector<8x128xf32>
    %82 = arith.mulf %80, %81 : vector<8x128xf32>
    %83 = arith.addf %77, %82 : vector<8x128xf32>
    %84 = vector.extract_strided_slice %9 {offsets = [0, 2], sizes = [8, 1], strides = [1, 1]} : vector<8x36xf32> to vector<8x1xf32>
    %85 = vector.extract_strided_slice %10 {offsets = [0, 2], sizes = [8, 1], strides = [1, 1]} : vector<8x36xf32> to vector<8x1xf32>
    %86 = vector.extract_strided_slice %9 {offsets = [0, 20], sizes = [8, 1], strides = [1, 1]} : vector<8x36xf32> to vector<8x1xf32>
    %87 = vector.extract_strided_slice %10 {offsets = [0, 20], sizes = [8, 1], strides = [1, 1]} : vector<8x36xf32> to vector<8x1xf32>
    %c120_i32 = arith.constant 120 : i32
    %88 = tpu.dynamic_rotate %83 by %c120_i32 dim 1 : vector<8x128xf32>, i32 -> vector<8x128xf32>
    %c8_i32 = arith.constant 8 : i32
    %89 = tpu.dynamic_rotate %83 by %c8_i32 dim 1 : vector<8x128xf32>, i32 -> vector<8x128xf32>
    %90 = vector.shape_cast %28 : vector<1x128xi1> to vector<1x128xi1>
    %91 = vector.broadcast %90 : vector<1x128xi1> to vector<8x128xi1>
    %92 = arith.select %91, %88, %89 : vector<8x128xi1>, vector<8x128xf32>
    %93 = vector.broadcast %84 : vector<8x1xf32> to vector<8x128xf32>
    %94 = arith.mulf %93, %83 : vector<8x128xf32>
    %95 = vector.broadcast %85 : vector<8x1xf32> to vector<8x128xf32>
    %96 = vector.broadcast %13 : vector<1x128xf32> to vector<8x128xf32>
    %97 = arith.mulf %95, %96 : vector<8x128xf32>
    %98 = arith.mulf %97, %92 : vector<8x128xf32>
    %99 = arith.addf %94, %98 : vector<8x128xf32>
    %100 = vector.broadcast %86 : vector<8x1xf32> to vector<8x128xf32>
    %101 = arith.mulf %100, %99 : vector<8x128xf32>
    %102 = vector.broadcast %87 : vector<8x1xf32> to vector<8x128xf32>
    %103 = vector.broadcast %19 : vector<1x128xf32> to vector<8x128xf32>
    %104 = arith.mulf %102, %103 : vector<8x128xf32>
    %c64_i32_25 = arith.constant 64 : i32
    %105 = tpu.dynamic_rotate %99 by %c64_i32_25 dim 1 : vector<8x128xf32>, i32 -> vector<8x128xf32>
    %106 = arith.mulf %104, %105 : vector<8x128xf32>
    %107 = arith.addf %101, %106 : vector<8x128xf32>
    %108 = vector.extract_strided_slice %9 {offsets = [0, 3], sizes = [8, 1], strides = [1, 1]} : vector<8x36xf32> to vector<8x1xf32>
    %109 = vector.extract_strided_slice %10 {offsets = [0, 3], sizes = [8, 1], strides = [1, 1]} : vector<8x36xf32> to vector<8x1xf32>
    %110 = vector.extract_strided_slice %9 {offsets = [0, 21], sizes = [8, 1], strides = [1, 1]} : vector<8x36xf32> to vector<8x1xf32>
    %111 = vector.extract_strided_slice %10 {offsets = [0, 21], sizes = [8, 1], strides = [1, 1]} : vector<8x36xf32> to vector<8x1xf32>
    %c124_i32 = arith.constant 124 : i32
    %112 = tpu.dynamic_rotate %107 by %c124_i32 dim 1 : vector<8x128xf32>, i32 -> vector<8x128xf32>
    %c4_i32 = arith.constant 4 : i32
    %113 = tpu.dynamic_rotate %107 by %c4_i32 dim 1 : vector<8x128xf32>, i32 -> vector<8x128xf32>
    %114 = vector.shape_cast %30 : vector<1x128xi1> to vector<1x128xi1>
    %115 = vector.broadcast %114 : vector<1x128xi1> to vector<8x128xi1>
    %116 = arith.select %115, %112, %113 : vector<8x128xi1>, vector<8x128xf32>
    %117 = vector.broadcast %108 : vector<8x1xf32> to vector<8x128xf32>
    %118 = arith.mulf %117, %107 : vector<8x128xf32>
    %119 = vector.broadcast %109 : vector<8x1xf32> to vector<8x128xf32>
    %120 = vector.broadcast %14 : vector<1x128xf32> to vector<8x128xf32>
    %121 = arith.mulf %119, %120 : vector<8x128xf32>
    %122 = arith.mulf %121, %116 : vector<8x128xf32>
    %123 = arith.addf %118, %122 : vector<8x128xf32>
    %124 = vector.broadcast %110 : vector<8x1xf32> to vector<8x128xf32>
    %125 = arith.mulf %124, %123 : vector<8x128xf32>
    %126 = vector.broadcast %111 : vector<8x1xf32> to vector<8x128xf32>
    %127 = vector.broadcast %20 : vector<1x128xf32> to vector<8x128xf32>
    %128 = arith.mulf %126, %127 : vector<8x128xf32>
    %c64_i32_26 = arith.constant 64 : i32
    %129 = tpu.dynamic_rotate %123 by %c64_i32_26 dim 1 : vector<8x128xf32>, i32 -> vector<8x128xf32>
    %130 = arith.mulf %128, %129 : vector<8x128xf32>
    %131 = arith.addf %125, %130 : vector<8x128xf32>
    %132 = vector.extract_strided_slice %9 {offsets = [0, 4], sizes = [8, 1], strides = [1, 1]} : vector<8x36xf32> to vector<8x1xf32>
    %133 = vector.extract_strided_slice %10 {offsets = [0, 4], sizes = [8, 1], strides = [1, 1]} : vector<8x36xf32> to vector<8x1xf32>
    %134 = vector.extract_strided_slice %9 {offsets = [0, 22], sizes = [8, 1], strides = [1, 1]} : vector<8x36xf32> to vector<8x1xf32>
    %135 = vector.extract_strided_slice %10 {offsets = [0, 22], sizes = [8, 1], strides = [1, 1]} : vector<8x36xf32> to vector<8x1xf32>
    %c126_i32 = arith.constant 126 : i32
    %136 = tpu.dynamic_rotate %131 by %c126_i32 dim 1 : vector<8x128xf32>, i32 -> vector<8x128xf32>
    %c2_i32 = arith.constant 2 : i32
    %137 = tpu.dynamic_rotate %131 by %c2_i32 dim 1 : vector<8x128xf32>, i32 -> vector<8x128xf32>
    %138 = vector.shape_cast %32 : vector<1x128xi1> to vector<1x128xi1>
    %139 = vector.broadcast %138 : vector<1x128xi1> to vector<8x128xi1>
    %140 = arith.select %139, %136, %137 : vector<8x128xi1>, vector<8x128xf32>
    %141 = vector.broadcast %132 : vector<8x1xf32> to vector<8x128xf32>
    %142 = arith.mulf %141, %131 : vector<8x128xf32>
    %143 = vector.broadcast %133 : vector<8x1xf32> to vector<8x128xf32>
    %144 = vector.broadcast %15 : vector<1x128xf32> to vector<8x128xf32>
    %145 = arith.mulf %143, %144 : vector<8x128xf32>
    %146 = arith.mulf %145, %140 : vector<8x128xf32>
    %147 = arith.addf %142, %146 : vector<8x128xf32>
    %148 = vector.broadcast %134 : vector<8x1xf32> to vector<8x128xf32>
    %149 = arith.mulf %148, %147 : vector<8x128xf32>
    %150 = vector.broadcast %135 : vector<8x1xf32> to vector<8x128xf32>
    %151 = vector.broadcast %21 : vector<1x128xf32> to vector<8x128xf32>
    %152 = arith.mulf %150, %151 : vector<8x128xf32>
    %c64_i32_27 = arith.constant 64 : i32
    %153 = tpu.dynamic_rotate %147 by %c64_i32_27 dim 1 : vector<8x128xf32>, i32 -> vector<8x128xf32>
    %154 = arith.mulf %152, %153 : vector<8x128xf32>
    %155 = arith.addf %149, %154 : vector<8x128xf32>
    %156 = vector.extract_strided_slice %9 {offsets = [0, 5], sizes = [8, 1], strides = [1, 1]} : vector<8x36xf32> to vector<8x1xf32>
    %157 = vector.extract_strided_slice %10 {offsets = [0, 5], sizes = [8, 1], strides = [1, 1]} : vector<8x36xf32> to vector<8x1xf32>
    %158 = vector.extract_strided_slice %9 {offsets = [0, 23], sizes = [8, 1], strides = [1, 1]} : vector<8x36xf32> to vector<8x1xf32>
    %159 = vector.extract_strided_slice %10 {offsets = [0, 23], sizes = [8, 1], strides = [1, 1]} : vector<8x36xf32> to vector<8x1xf32>
    %c127_i32 = arith.constant 127 : i32
    %160 = tpu.dynamic_rotate %155 by %c127_i32 dim 1 : vector<8x128xf32>, i32 -> vector<8x128xf32>
    %c1_i32 = arith.constant 1 : i32
    %161 = tpu.dynamic_rotate %155 by %c1_i32 dim 1 : vector<8x128xf32>, i32 -> vector<8x128xf32>
    %162 = vector.shape_cast %34 : vector<1x128xi1> to vector<1x128xi1>
    %163 = vector.broadcast %162 : vector<1x128xi1> to vector<8x128xi1>
    %164 = arith.select %163, %160, %161 : vector<8x128xi1>, vector<8x128xf32>
    %165 = vector.broadcast %156 : vector<8x1xf32> to vector<8x128xf32>
    %166 = arith.mulf %165, %155 : vector<8x128xf32>
    %167 = vector.broadcast %157 : vector<8x1xf32> to vector<8x128xf32>
    %168 = vector.broadcast %16 : vector<1x128xf32> to vector<8x128xf32>
    %169 = arith.mulf %167, %168 : vector<8x128xf32>
    %170 = arith.mulf %169, %164 : vector<8x128xf32>
    %171 = arith.addf %166, %170 : vector<8x128xf32>
    %172 = vector.broadcast %158 : vector<8x1xf32> to vector<8x128xf32>
    %173 = arith.mulf %172, %171 : vector<8x128xf32>
    %174 = vector.broadcast %159 : vector<8x1xf32> to vector<8x128xf32>
    %175 = vector.broadcast %22 : vector<1x128xf32> to vector<8x128xf32>
    %176 = arith.mulf %174, %175 : vector<8x128xf32>
    %c64_i32_28 = arith.constant 64 : i32
    %177 = tpu.dynamic_rotate %171 by %c64_i32_28 dim 1 : vector<8x128xf32>, i32 -> vector<8x128xf32>
    %178 = arith.mulf %176, %177 : vector<8x128xf32>
    %179 = arith.addf %173, %178 : vector<8x128xf32>
    %cst_29 = arith.constant dense<0.000000e+00> : vector<8x128xf32>
    %180 = tpu.matmul %179, %35, %cst_29 {dimension_numbers = #tpu.dot_dimension_numbers<[1], [0], [0], [1], [0, 0, 1, 1], [], []>} : vector<8x128xf32>, vector<128x128xf32>, vector<8x128xf32> -> vector<8x128xf32>
    %181 = vector.extract_strided_slice %9 {offsets = [0, 6], sizes = [8, 1], strides = [1, 1]} : vector<8x36xf32> to vector<8x1xf32>
    %182 = vector.extract_strided_slice %10 {offsets = [0, 6], sizes = [8, 1], strides = [1, 1]} : vector<8x36xf32> to vector<8x1xf32>
    %183 = vector.extract_strided_slice %9 {offsets = [0, 24], sizes = [8, 1], strides = [1, 1]} : vector<8x36xf32> to vector<8x1xf32>
    %184 = vector.extract_strided_slice %10 {offsets = [0, 24], sizes = [8, 1], strides = [1, 1]} : vector<8x36xf32> to vector<8x1xf32>
    %c96_i32_30 = arith.constant 96 : i32
    %185 = tpu.dynamic_rotate %180 by %c96_i32_30 dim 1 : vector<8x128xf32>, i32 -> vector<8x128xf32>
    %c32_i32_31 = arith.constant 32 : i32
    %186 = tpu.dynamic_rotate %180 by %c32_i32_31 dim 1 : vector<8x128xf32>, i32 -> vector<8x128xf32>
    %187 = vector.shape_cast %24 : vector<1x128xi1> to vector<1x128xi1>
    %188 = vector.broadcast %187 : vector<1x128xi1> to vector<8x128xi1>
    %189 = arith.select %188, %185, %186 : vector<8x128xi1>, vector<8x128xf32>
    %190 = vector.broadcast %181 : vector<8x1xf32> to vector<8x128xf32>
    %191 = arith.mulf %190, %180 : vector<8x128xf32>
    %192 = vector.broadcast %182 : vector<8x1xf32> to vector<8x128xf32>
    %193 = vector.broadcast %11 : vector<1x128xf32> to vector<8x128xf32>
    %194 = arith.mulf %192, %193 : vector<8x128xf32>
    %195 = arith.mulf %194, %189 : vector<8x128xf32>
    %196 = arith.addf %191, %195 : vector<8x128xf32>
    %197 = vector.broadcast %183 : vector<8x1xf32> to vector<8x128xf32>
    %198 = arith.mulf %197, %196 : vector<8x128xf32>
    %199 = vector.broadcast %184 : vector<8x1xf32> to vector<8x128xf32>
    %200 = vector.broadcast %17 : vector<1x128xf32> to vector<8x128xf32>
    %201 = arith.mulf %199, %200 : vector<8x128xf32>
    %c64_i32_32 = arith.constant 64 : i32
    %202 = tpu.dynamic_rotate %196 by %c64_i32_32 dim 1 : vector<8x128xf32>, i32 -> vector<8x128xf32>
    %203 = arith.mulf %201, %202 : vector<8x128xf32>
    %204 = arith.addf %198, %203 : vector<8x128xf32>
    %205 = vector.extract_strided_slice %9 {offsets = [0, 7], sizes = [8, 1], strides = [1, 1]} : vector<8x36xf32> to vector<8x1xf32>
    %206 = vector.extract_strided_slice %10 {offsets = [0, 7], sizes = [8, 1], strides = [1, 1]} : vector<8x36xf32> to vector<8x1xf32>
    %207 = vector.extract_strided_slice %9 {offsets = [0, 25], sizes = [8, 1], strides = [1, 1]} : vector<8x36xf32> to vector<8x1xf32>
    %208 = vector.extract_strided_slice %10 {offsets = [0, 25], sizes = [8, 1], strides = [1, 1]} : vector<8x36xf32> to vector<8x1xf32>
    %c112_i32_33 = arith.constant 112 : i32
    %209 = tpu.dynamic_rotate %204 by %c112_i32_33 dim 1 : vector<8x128xf32>, i32 -> vector<8x128xf32>
    %c16_i32_34 = arith.constant 16 : i32
    %210 = tpu.dynamic_rotate %204 by %c16_i32_34 dim 1 : vector<8x128xf32>, i32 -> vector<8x128xf32>
    %211 = vector.shape_cast %26 : vector<1x128xi1> to vector<1x128xi1>
    %212 = vector.broadcast %211 : vector<1x128xi1> to vector<8x128xi1>
    %213 = arith.select %212, %209, %210 : vector<8x128xi1>, vector<8x128xf32>
    %214 = vector.broadcast %205 : vector<8x1xf32> to vector<8x128xf32>
    %215 = arith.mulf %214, %204 : vector<8x128xf32>
    %216 = vector.broadcast %206 : vector<8x1xf32> to vector<8x128xf32>
    %217 = vector.broadcast %12 : vector<1x128xf32> to vector<8x128xf32>
    %218 = arith.mulf %216, %217 : vector<8x128xf32>
    %219 = arith.mulf %218, %213 : vector<8x128xf32>
    %220 = arith.addf %215, %219 : vector<8x128xf32>
    %221 = vector.broadcast %207 : vector<8x1xf32> to vector<8x128xf32>
    %222 = arith.mulf %221, %220 : vector<8x128xf32>
    %223 = vector.broadcast %208 : vector<8x1xf32> to vector<8x128xf32>
    %224 = vector.broadcast %18 : vector<1x128xf32> to vector<8x128xf32>
    %225 = arith.mulf %223, %224 : vector<8x128xf32>
    %c64_i32_35 = arith.constant 64 : i32
    %226 = tpu.dynamic_rotate %220 by %c64_i32_35 dim 1 : vector<8x128xf32>, i32 -> vector<8x128xf32>
    %227 = arith.mulf %225, %226 : vector<8x128xf32>
    %228 = arith.addf %222, %227 : vector<8x128xf32>
    %229 = vector.extract_strided_slice %9 {offsets = [0, 8], sizes = [8, 1], strides = [1, 1]} : vector<8x36xf32> to vector<8x1xf32>
    %230 = vector.extract_strided_slice %10 {offsets = [0, 8], sizes = [8, 1], strides = [1, 1]} : vector<8x36xf32> to vector<8x1xf32>
    %231 = vector.extract_strided_slice %9 {offsets = [0, 26], sizes = [8, 1], strides = [1, 1]} : vector<8x36xf32> to vector<8x1xf32>
    %232 = vector.extract_strided_slice %10 {offsets = [0, 26], sizes = [8, 1], strides = [1, 1]} : vector<8x36xf32> to vector<8x1xf32>
    %c120_i32_36 = arith.constant 120 : i32
    %233 = tpu.dynamic_rotate %228 by %c120_i32_36 dim 1 : vector<8x128xf32>, i32 -> vector<8x128xf32>
    %c8_i32_37 = arith.constant 8 : i32
    %234 = tpu.dynamic_rotate %228 by %c8_i32_37 dim 1 : vector<8x128xf32>, i32 -> vector<8x128xf32>
    %235 = vector.shape_cast %28 : vector<1x128xi1> to vector<1x128xi1>
    %236 = vector.broadcast %235 : vector<1x128xi1> to vector<8x128xi1>
    %237 = arith.select %236, %233, %234 : vector<8x128xi1>, vector<8x128xf32>
    %238 = vector.broadcast %229 : vector<8x1xf32> to vector<8x128xf32>
    %239 = arith.mulf %238, %228 : vector<8x128xf32>
    %240 = vector.broadcast %230 : vector<8x1xf32> to vector<8x128xf32>
    %241 = vector.broadcast %13 : vector<1x128xf32> to vector<8x128xf32>
    %242 = arith.mulf %240, %241 : vector<8x128xf32>
    %243 = arith.mulf %242, %237 : vector<8x128xf32>
    %244 = arith.addf %239, %243 : vector<8x128xf32>
    %245 = vector.broadcast %231 : vector<8x1xf32> to vector<8x128xf32>
    %246 = arith.mulf %245, %244 : vector<8x128xf32>
    %247 = vector.broadcast %232 : vector<8x1xf32> to vector<8x128xf32>
    %248 = vector.broadcast %19 : vector<1x128xf32> to vector<8x128xf32>
    %249 = arith.mulf %247, %248 : vector<8x128xf32>
    %c64_i32_38 = arith.constant 64 : i32
    %250 = tpu.dynamic_rotate %244 by %c64_i32_38 dim 1 : vector<8x128xf32>, i32 -> vector<8x128xf32>
    %251 = arith.mulf %249, %250 : vector<8x128xf32>
    %252 = arith.addf %246, %251 : vector<8x128xf32>
    %253 = vector.extract_strided_slice %9 {offsets = [0, 9], sizes = [8, 1], strides = [1, 1]} : vector<8x36xf32> to vector<8x1xf32>
    %254 = vector.extract_strided_slice %10 {offsets = [0, 9], sizes = [8, 1], strides = [1, 1]} : vector<8x36xf32> to vector<8x1xf32>
    %255 = vector.extract_strided_slice %9 {offsets = [0, 27], sizes = [8, 1], strides = [1, 1]} : vector<8x36xf32> to vector<8x1xf32>
    %256 = vector.extract_strided_slice %10 {offsets = [0, 27], sizes = [8, 1], strides = [1, 1]} : vector<8x36xf32> to vector<8x1xf32>
    %c124_i32_39 = arith.constant 124 : i32
    %257 = tpu.dynamic_rotate %252 by %c124_i32_39 dim 1 : vector<8x128xf32>, i32 -> vector<8x128xf32>
    %c4_i32_40 = arith.constant 4 : i32
    %258 = tpu.dynamic_rotate %252 by %c4_i32_40 dim 1 : vector<8x128xf32>, i32 -> vector<8x128xf32>
    %259 = vector.shape_cast %30 : vector<1x128xi1> to vector<1x128xi1>
    %260 = vector.broadcast %259 : vector<1x128xi1> to vector<8x128xi1>
    %261 = arith.select %260, %257, %258 : vector<8x128xi1>, vector<8x128xf32>
    %262 = vector.broadcast %253 : vector<8x1xf32> to vector<8x128xf32>
    %263 = arith.mulf %262, %252 : vector<8x128xf32>
    %264 = vector.broadcast %254 : vector<8x1xf32> to vector<8x128xf32>
    %265 = vector.broadcast %14 : vector<1x128xf32> to vector<8x128xf32>
    %266 = arith.mulf %264, %265 : vector<8x128xf32>
    %267 = arith.mulf %266, %261 : vector<8x128xf32>
    %268 = arith.addf %263, %267 : vector<8x128xf32>
    %269 = vector.broadcast %255 : vector<8x1xf32> to vector<8x128xf32>
    %270 = arith.mulf %269, %268 : vector<8x128xf32>
    %271 = vector.broadcast %256 : vector<8x1xf32> to vector<8x128xf32>
    %272 = vector.broadcast %20 : vector<1x128xf32> to vector<8x128xf32>
    %273 = arith.mulf %271, %272 : vector<8x128xf32>
    %c64_i32_41 = arith.constant 64 : i32
    %274 = tpu.dynamic_rotate %268 by %c64_i32_41 dim 1 : vector<8x128xf32>, i32 -> vector<8x128xf32>
    %275 = arith.mulf %273, %274 : vector<8x128xf32>
    %276 = arith.addf %270, %275 : vector<8x128xf32>
    %277 = vector.extract_strided_slice %9 {offsets = [0, 10], sizes = [8, 1], strides = [1, 1]} : vector<8x36xf32> to vector<8x1xf32>
    %278 = vector.extract_strided_slice %10 {offsets = [0, 10], sizes = [8, 1], strides = [1, 1]} : vector<8x36xf32> to vector<8x1xf32>
    %279 = vector.extract_strided_slice %9 {offsets = [0, 28], sizes = [8, 1], strides = [1, 1]} : vector<8x36xf32> to vector<8x1xf32>
    %280 = vector.extract_strided_slice %10 {offsets = [0, 28], sizes = [8, 1], strides = [1, 1]} : vector<8x36xf32> to vector<8x1xf32>
    %c126_i32_42 = arith.constant 126 : i32
    %281 = tpu.dynamic_rotate %276 by %c126_i32_42 dim 1 : vector<8x128xf32>, i32 -> vector<8x128xf32>
    %c2_i32_43 = arith.constant 2 : i32
    %282 = tpu.dynamic_rotate %276 by %c2_i32_43 dim 1 : vector<8x128xf32>, i32 -> vector<8x128xf32>
    %283 = vector.shape_cast %32 : vector<1x128xi1> to vector<1x128xi1>
    %284 = vector.broadcast %283 : vector<1x128xi1> to vector<8x128xi1>
    %285 = arith.select %284, %281, %282 : vector<8x128xi1>, vector<8x128xf32>
    %286 = vector.broadcast %277 : vector<8x1xf32> to vector<8x128xf32>
    %287 = arith.mulf %286, %276 : vector<8x128xf32>
    %288 = vector.broadcast %278 : vector<8x1xf32> to vector<8x128xf32>
    %289 = vector.broadcast %15 : vector<1x128xf32> to vector<8x128xf32>
    %290 = arith.mulf %288, %289 : vector<8x128xf32>
    %291 = arith.mulf %290, %285 : vector<8x128xf32>
    %292 = arith.addf %287, %291 : vector<8x128xf32>
    %293 = vector.broadcast %279 : vector<8x1xf32> to vector<8x128xf32>
    %294 = arith.mulf %293, %292 : vector<8x128xf32>
    %295 = vector.broadcast %280 : vector<8x1xf32> to vector<8x128xf32>
    %296 = vector.broadcast %21 : vector<1x128xf32> to vector<8x128xf32>
    %297 = arith.mulf %295, %296 : vector<8x128xf32>
    %c64_i32_44 = arith.constant 64 : i32
    %298 = tpu.dynamic_rotate %292 by %c64_i32_44 dim 1 : vector<8x128xf32>, i32 -> vector<8x128xf32>
    %299 = arith.mulf %297, %298 : vector<8x128xf32>
    %300 = arith.addf %294, %299 : vector<8x128xf32>
    %301 = vector.extract_strided_slice %9 {offsets = [0, 11], sizes = [8, 1], strides = [1, 1]} : vector<8x36xf32> to vector<8x1xf32>
    %302 = vector.extract_strided_slice %10 {offsets = [0, 11], sizes = [8, 1], strides = [1, 1]} : vector<8x36xf32> to vector<8x1xf32>
    %303 = vector.extract_strided_slice %9 {offsets = [0, 29], sizes = [8, 1], strides = [1, 1]} : vector<8x36xf32> to vector<8x1xf32>
    %304 = vector.extract_strided_slice %10 {offsets = [0, 29], sizes = [8, 1], strides = [1, 1]} : vector<8x36xf32> to vector<8x1xf32>
    %c127_i32_45 = arith.constant 127 : i32
    %305 = tpu.dynamic_rotate %300 by %c127_i32_45 dim 1 : vector<8x128xf32>, i32 -> vector<8x128xf32>
    %c1_i32_46 = arith.constant 1 : i32
    %306 = tpu.dynamic_rotate %300 by %c1_i32_46 dim 1 : vector<8x128xf32>, i32 -> vector<8x128xf32>
    %307 = vector.shape_cast %34 : vector<1x128xi1> to vector<1x128xi1>
    %308 = vector.broadcast %307 : vector<1x128xi1> to vector<8x128xi1>
    %309 = arith.select %308, %305, %306 : vector<8x128xi1>, vector<8x128xf32>
    %310 = vector.broadcast %301 : vector<8x1xf32> to vector<8x128xf32>
    %311 = arith.mulf %310, %300 : vector<8x128xf32>
    %312 = vector.broadcast %302 : vector<8x1xf32> to vector<8x128xf32>
    %313 = vector.broadcast %16 : vector<1x128xf32> to vector<8x128xf32>
    %314 = arith.mulf %312, %313 : vector<8x128xf32>
    %315 = arith.mulf %314, %309 : vector<8x128xf32>
    %316 = arith.addf %311, %315 : vector<8x128xf32>
    %317 = vector.broadcast %303 : vector<8x1xf32> to vector<8x128xf32>
    %318 = arith.mulf %317, %316 : vector<8x128xf32>
    %319 = vector.broadcast %304 : vector<8x1xf32> to vector<8x128xf32>
    %320 = vector.broadcast %22 : vector<1x128xf32> to vector<8x128xf32>
    %321 = arith.mulf %319, %320 : vector<8x128xf32>
    %c64_i32_47 = arith.constant 64 : i32
    %322 = tpu.dynamic_rotate %316 by %c64_i32_47 dim 1 : vector<8x128xf32>, i32 -> vector<8x128xf32>
    %323 = arith.mulf %321, %322 : vector<8x128xf32>
    %324 = arith.addf %318, %323 : vector<8x128xf32>
    %cst_48 = arith.constant dense<0.000000e+00> : vector<8x128xf32>
    %325 = tpu.matmul %324, %35, %cst_48 {dimension_numbers = #tpu.dot_dimension_numbers<[1], [0], [0], [1], [0, 0, 1, 1], [], []>} : vector<8x128xf32>, vector<128x128xf32>, vector<8x128xf32> -> vector<8x128xf32>
    %326 = vector.extract_strided_slice %9 {offsets = [0, 12], sizes = [8, 1], strides = [1, 1]} : vector<8x36xf32> to vector<8x1xf32>
    %327 = vector.extract_strided_slice %10 {offsets = [0, 12], sizes = [8, 1], strides = [1, 1]} : vector<8x36xf32> to vector<8x1xf32>
    %328 = vector.extract_strided_slice %9 {offsets = [0, 30], sizes = [8, 1], strides = [1, 1]} : vector<8x36xf32> to vector<8x1xf32>
    %329 = vector.extract_strided_slice %10 {offsets = [0, 30], sizes = [8, 1], strides = [1, 1]} : vector<8x36xf32> to vector<8x1xf32>
    %c96_i32_49 = arith.constant 96 : i32
    %330 = tpu.dynamic_rotate %325 by %c96_i32_49 dim 1 : vector<8x128xf32>, i32 -> vector<8x128xf32>
    %c32_i32_50 = arith.constant 32 : i32
    %331 = tpu.dynamic_rotate %325 by %c32_i32_50 dim 1 : vector<8x128xf32>, i32 -> vector<8x128xf32>
    %332 = vector.shape_cast %24 : vector<1x128xi1> to vector<1x128xi1>
    %333 = vector.broadcast %332 : vector<1x128xi1> to vector<8x128xi1>
    %334 = arith.select %333, %330, %331 : vector<8x128xi1>, vector<8x128xf32>
    %335 = vector.broadcast %326 : vector<8x1xf32> to vector<8x128xf32>
    %336 = arith.mulf %335, %325 : vector<8x128xf32>
    %337 = vector.broadcast %327 : vector<8x1xf32> to vector<8x128xf32>
    %338 = vector.broadcast %11 : vector<1x128xf32> to vector<8x128xf32>
    %339 = arith.mulf %337, %338 : vector<8x128xf32>
    %340 = arith.mulf %339, %334 : vector<8x128xf32>
    %341 = arith.addf %336, %340 : vector<8x128xf32>
    %342 = vector.broadcast %328 : vector<8x1xf32> to vector<8x128xf32>
    %343 = arith.mulf %342, %341 : vector<8x128xf32>
    %344 = vector.broadcast %329 : vector<8x1xf32> to vector<8x128xf32>
    %345 = vector.broadcast %17 : vector<1x128xf32> to vector<8x128xf32>
    %346 = arith.mulf %344, %345 : vector<8x128xf32>
    %c64_i32_51 = arith.constant 64 : i32
    %347 = tpu.dynamic_rotate %341 by %c64_i32_51 dim 1 : vector<8x128xf32>, i32 -> vector<8x128xf32>
    %348 = arith.mulf %346, %347 : vector<8x128xf32>
    %349 = arith.addf %343, %348 : vector<8x128xf32>
    %350 = vector.extract_strided_slice %9 {offsets = [0, 13], sizes = [8, 1], strides = [1, 1]} : vector<8x36xf32> to vector<8x1xf32>
    %351 = vector.extract_strided_slice %10 {offsets = [0, 13], sizes = [8, 1], strides = [1, 1]} : vector<8x36xf32> to vector<8x1xf32>
    %352 = vector.extract_strided_slice %9 {offsets = [0, 31], sizes = [8, 1], strides = [1, 1]} : vector<8x36xf32> to vector<8x1xf32>
    %353 = vector.extract_strided_slice %10 {offsets = [0, 31], sizes = [8, 1], strides = [1, 1]} : vector<8x36xf32> to vector<8x1xf32>
    %c112_i32_52 = arith.constant 112 : i32
    %354 = tpu.dynamic_rotate %349 by %c112_i32_52 dim 1 : vector<8x128xf32>, i32 -> vector<8x128xf32>
    %c16_i32_53 = arith.constant 16 : i32
    %355 = tpu.dynamic_rotate %349 by %c16_i32_53 dim 1 : vector<8x128xf32>, i32 -> vector<8x128xf32>
    %356 = vector.shape_cast %26 : vector<1x128xi1> to vector<1x128xi1>
    %357 = vector.broadcast %356 : vector<1x128xi1> to vector<8x128xi1>
    %358 = arith.select %357, %354, %355 : vector<8x128xi1>, vector<8x128xf32>
    %359 = vector.broadcast %350 : vector<8x1xf32> to vector<8x128xf32>
    %360 = arith.mulf %359, %349 : vector<8x128xf32>
    %361 = vector.broadcast %351 : vector<8x1xf32> to vector<8x128xf32>
    %362 = vector.broadcast %12 : vector<1x128xf32> to vector<8x128xf32>
    %363 = arith.mulf %361, %362 : vector<8x128xf32>
    %364 = arith.mulf %363, %358 : vector<8x128xf32>
    %365 = arith.addf %360, %364 : vector<8x128xf32>
    %366 = vector.broadcast %352 : vector<8x1xf32> to vector<8x128xf32>
    %367 = arith.mulf %366, %365 : vector<8x128xf32>
    %368 = vector.broadcast %353 : vector<8x1xf32> to vector<8x128xf32>
    %369 = vector.broadcast %18 : vector<1x128xf32> to vector<8x128xf32>
    %370 = arith.mulf %368, %369 : vector<8x128xf32>
    %c64_i32_54 = arith.constant 64 : i32
    %371 = tpu.dynamic_rotate %365 by %c64_i32_54 dim 1 : vector<8x128xf32>, i32 -> vector<8x128xf32>
    %372 = arith.mulf %370, %371 : vector<8x128xf32>
    %373 = arith.addf %367, %372 : vector<8x128xf32>
    %374 = vector.extract_strided_slice %9 {offsets = [0, 14], sizes = [8, 1], strides = [1, 1]} : vector<8x36xf32> to vector<8x1xf32>
    %375 = vector.extract_strided_slice %10 {offsets = [0, 14], sizes = [8, 1], strides = [1, 1]} : vector<8x36xf32> to vector<8x1xf32>
    %376 = vector.extract_strided_slice %9 {offsets = [0, 32], sizes = [8, 1], strides = [1, 1]} : vector<8x36xf32> to vector<8x1xf32>
    %377 = vector.extract_strided_slice %10 {offsets = [0, 32], sizes = [8, 1], strides = [1, 1]} : vector<8x36xf32> to vector<8x1xf32>
    %c120_i32_55 = arith.constant 120 : i32
    %378 = tpu.dynamic_rotate %373 by %c120_i32_55 dim 1 : vector<8x128xf32>, i32 -> vector<8x128xf32>
    %c8_i32_56 = arith.constant 8 : i32
    %379 = tpu.dynamic_rotate %373 by %c8_i32_56 dim 1 : vector<8x128xf32>, i32 -> vector<8x128xf32>
    %380 = vector.shape_cast %28 : vector<1x128xi1> to vector<1x128xi1>
    %381 = vector.broadcast %380 : vector<1x128xi1> to vector<8x128xi1>
    %382 = arith.select %381, %378, %379 : vector<8x128xi1>, vector<8x128xf32>
    %383 = vector.broadcast %374 : vector<8x1xf32> to vector<8x128xf32>
    %384 = arith.mulf %383, %373 : vector<8x128xf32>
    %385 = vector.broadcast %375 : vector<8x1xf32> to vector<8x128xf32>
    %386 = vector.broadcast %13 : vector<1x128xf32> to vector<8x128xf32>
    %387 = arith.mulf %385, %386 : vector<8x128xf32>
    %388 = arith.mulf %387, %382 : vector<8x128xf32>
    %389 = arith.addf %384, %388 : vector<8x128xf32>
    %390 = vector.broadcast %376 : vector<8x1xf32> to vector<8x128xf32>
    %391 = arith.mulf %390, %389 : vector<8x128xf32>
    %392 = vector.broadcast %377 : vector<8x1xf32> to vector<8x128xf32>
    %393 = vector.broadcast %19 : vector<1x128xf32> to vector<8x128xf32>
    %394 = arith.mulf %392, %393 : vector<8x128xf32>
    %c64_i32_57 = arith.constant 64 : i32
    %395 = tpu.dynamic_rotate %389 by %c64_i32_57 dim 1 : vector<8x128xf32>, i32 -> vector<8x128xf32>
    %396 = arith.mulf %394, %395 : vector<8x128xf32>
    %397 = arith.addf %391, %396 : vector<8x128xf32>
    %398 = vector.extract_strided_slice %9 {offsets = [0, 15], sizes = [8, 1], strides = [1, 1]} : vector<8x36xf32> to vector<8x1xf32>
    %399 = vector.extract_strided_slice %10 {offsets = [0, 15], sizes = [8, 1], strides = [1, 1]} : vector<8x36xf32> to vector<8x1xf32>
    %400 = vector.extract_strided_slice %9 {offsets = [0, 33], sizes = [8, 1], strides = [1, 1]} : vector<8x36xf32> to vector<8x1xf32>
    %401 = vector.extract_strided_slice %10 {offsets = [0, 33], sizes = [8, 1], strides = [1, 1]} : vector<8x36xf32> to vector<8x1xf32>
    %c124_i32_58 = arith.constant 124 : i32
    %402 = tpu.dynamic_rotate %397 by %c124_i32_58 dim 1 : vector<8x128xf32>, i32 -> vector<8x128xf32>
    %c4_i32_59 = arith.constant 4 : i32
    %403 = tpu.dynamic_rotate %397 by %c4_i32_59 dim 1 : vector<8x128xf32>, i32 -> vector<8x128xf32>
    %404 = vector.shape_cast %30 : vector<1x128xi1> to vector<1x128xi1>
    %405 = vector.broadcast %404 : vector<1x128xi1> to vector<8x128xi1>
    %406 = arith.select %405, %402, %403 : vector<8x128xi1>, vector<8x128xf32>
    %407 = vector.broadcast %398 : vector<8x1xf32> to vector<8x128xf32>
    %408 = arith.mulf %407, %397 : vector<8x128xf32>
    %409 = vector.broadcast %399 : vector<8x1xf32> to vector<8x128xf32>
    %410 = vector.broadcast %14 : vector<1x128xf32> to vector<8x128xf32>
    %411 = arith.mulf %409, %410 : vector<8x128xf32>
    %412 = arith.mulf %411, %406 : vector<8x128xf32>
    %413 = arith.addf %408, %412 : vector<8x128xf32>
    %414 = vector.broadcast %400 : vector<8x1xf32> to vector<8x128xf32>
    %415 = arith.mulf %414, %413 : vector<8x128xf32>
    %416 = vector.broadcast %401 : vector<8x1xf32> to vector<8x128xf32>
    %417 = vector.broadcast %20 : vector<1x128xf32> to vector<8x128xf32>
    %418 = arith.mulf %416, %417 : vector<8x128xf32>
    %c64_i32_60 = arith.constant 64 : i32
    %419 = tpu.dynamic_rotate %413 by %c64_i32_60 dim 1 : vector<8x128xf32>, i32 -> vector<8x128xf32>
    %420 = arith.mulf %418, %419 : vector<8x128xf32>
    %421 = arith.addf %415, %420 : vector<8x128xf32>
    %422 = vector.extract_strided_slice %9 {offsets = [0, 16], sizes = [8, 1], strides = [1, 1]} : vector<8x36xf32> to vector<8x1xf32>
    %423 = vector.extract_strided_slice %10 {offsets = [0, 16], sizes = [8, 1], strides = [1, 1]} : vector<8x36xf32> to vector<8x1xf32>
    %424 = vector.extract_strided_slice %9 {offsets = [0, 34], sizes = [8, 1], strides = [1, 1]} : vector<8x36xf32> to vector<8x1xf32>
    %425 = vector.extract_strided_slice %10 {offsets = [0, 34], sizes = [8, 1], strides = [1, 1]} : vector<8x36xf32> to vector<8x1xf32>
    %c126_i32_61 = arith.constant 126 : i32
    %426 = tpu.dynamic_rotate %421 by %c126_i32_61 dim 1 : vector<8x128xf32>, i32 -> vector<8x128xf32>
    %c2_i32_62 = arith.constant 2 : i32
    %427 = tpu.dynamic_rotate %421 by %c2_i32_62 dim 1 : vector<8x128xf32>, i32 -> vector<8x128xf32>
    %428 = vector.shape_cast %32 : vector<1x128xi1> to vector<1x128xi1>
    %429 = vector.broadcast %428 : vector<1x128xi1> to vector<8x128xi1>
    %430 = arith.select %429, %426, %427 : vector<8x128xi1>, vector<8x128xf32>
    %431 = vector.broadcast %422 : vector<8x1xf32> to vector<8x128xf32>
    %432 = arith.mulf %431, %421 : vector<8x128xf32>
    %433 = vector.broadcast %423 : vector<8x1xf32> to vector<8x128xf32>
    %434 = vector.broadcast %15 : vector<1x128xf32> to vector<8x128xf32>
    %435 = arith.mulf %433, %434 : vector<8x128xf32>
    %436 = arith.mulf %435, %430 : vector<8x128xf32>
    %437 = arith.addf %432, %436 : vector<8x128xf32>
    %438 = vector.broadcast %424 : vector<8x1xf32> to vector<8x128xf32>
    %439 = arith.mulf %438, %437 : vector<8x128xf32>
    %440 = vector.broadcast %425 : vector<8x1xf32> to vector<8x128xf32>
    %441 = vector.broadcast %21 : vector<1x128xf32> to vector<8x128xf32>
    %442 = arith.mulf %440, %441 : vector<8x128xf32>
    %c64_i32_63 = arith.constant 64 : i32
    %443 = tpu.dynamic_rotate %437 by %c64_i32_63 dim 1 : vector<8x128xf32>, i32 -> vector<8x128xf32>
    %444 = arith.mulf %442, %443 : vector<8x128xf32>
    %445 = arith.addf %439, %444 : vector<8x128xf32>
    %446 = vector.extract_strided_slice %9 {offsets = [0, 17], sizes = [8, 1], strides = [1, 1]} : vector<8x36xf32> to vector<8x1xf32>
    %447 = vector.extract_strided_slice %10 {offsets = [0, 17], sizes = [8, 1], strides = [1, 1]} : vector<8x36xf32> to vector<8x1xf32>
    %448 = vector.extract_strided_slice %9 {offsets = [0, 35], sizes = [8, 1], strides = [1, 1]} : vector<8x36xf32> to vector<8x1xf32>
    %449 = vector.extract_strided_slice %10 {offsets = [0, 35], sizes = [8, 1], strides = [1, 1]} : vector<8x36xf32> to vector<8x1xf32>
    %c127_i32_64 = arith.constant 127 : i32
    %450 = tpu.dynamic_rotate %445 by %c127_i32_64 dim 1 : vector<8x128xf32>, i32 -> vector<8x128xf32>
    %c1_i32_65 = arith.constant 1 : i32
    %451 = tpu.dynamic_rotate %445 by %c1_i32_65 dim 1 : vector<8x128xf32>, i32 -> vector<8x128xf32>
    %452 = vector.shape_cast %34 : vector<1x128xi1> to vector<1x128xi1>
    %453 = vector.broadcast %452 : vector<1x128xi1> to vector<8x128xi1>
    %454 = arith.select %453, %450, %451 : vector<8x128xi1>, vector<8x128xf32>
    %455 = vector.broadcast %446 : vector<8x1xf32> to vector<8x128xf32>
    %456 = arith.mulf %455, %445 : vector<8x128xf32>
    %457 = vector.broadcast %447 : vector<8x1xf32> to vector<8x128xf32>
    %458 = vector.broadcast %16 : vector<1x128xf32> to vector<8x128xf32>
    %459 = arith.mulf %457, %458 : vector<8x128xf32>
    %460 = arith.mulf %459, %454 : vector<8x128xf32>
    %461 = arith.addf %456, %460 : vector<8x128xf32>
    %462 = vector.broadcast %448 : vector<8x1xf32> to vector<8x128xf32>
    %463 = arith.mulf %462, %461 : vector<8x128xf32>
    %464 = vector.broadcast %449 : vector<8x1xf32> to vector<8x128xf32>
    %465 = vector.broadcast %22 : vector<1x128xf32> to vector<8x128xf32>
    %466 = arith.mulf %464, %465 : vector<8x128xf32>
    %c64_i32_66 = arith.constant 64 : i32
    %467 = tpu.dynamic_rotate %461 by %c64_i32_66 dim 1 : vector<8x128xf32>, i32 -> vector<8x128xf32>
    %468 = arith.mulf %466, %467 : vector<8x128xf32>
    %469 = arith.addf %463, %468 : vector<8x128xf32>
    %470 = arith.mulf %469, %469 : vector<8x128xf32>
    %c0_67 = arith.constant 0 : index
    %c0_68 = arith.constant 0 : index
    %471 = vector.load %arg4[%c0_67, %c0_68] : memref<128x128xf32, #tpu.memory_space<vmem>>, vector<128x128xf32>
    %cst_69 = arith.constant dense<0.000000e+00> : vector<8x128xf32>
    %472 = tpu.matmul %470, %471, %cst_69 {dimension_numbers = #tpu.dot_dimension_numbers<[1], [0], [0], [1], [0, 0, 1, 1], [], []>} : vector<8x128xf32>, vector<128x128xf32>, vector<8x128xf32> -> vector<8x128xf32>
    %c0_70 = arith.constant 0 : index
    %c0_71 = arith.constant 0 : index
    %473 = vector.load %arg5[%c0_70, %c0_71] : memref<1x128xf32, #tpu.memory_space<vmem>>, vector<1x128xf32>
    %474 = vector.broadcast %473 : vector<1x128xf32> to vector<8x128xf32>
    %475 = arith.addf %472, %474 : vector<8x128xf32>
    %c0_72 = arith.constant 0 : index
    %c0_73 = arith.constant 0 : index
    %476 = vector.load %arg6[%c0_72, %c0_73] : memref<8x128xf32, #tpu.memory_space<vmem>>, vector<8x128xf32>
    tpu.vector_store %arg6[%c0_72, %c0_73], %475 {strides = array<i32>} : memref<8x128xf32, #tpu.memory_space<vmem>>, vector<8x128xf32>,
    return
  }
  func.func @transform_0(%arg0: i32) -> (i32, i32) {
    %c0_i32 = arith.constant 0 : i32
    %c0_i32_0 = arith.constant 0 : i32
    return %arg0, %c0_i32 : i32, i32
  }
  func.func @transform_1(%arg0: i32) -> (i32, i32) {
    %c0_i32 = arith.constant 0 : i32
    %c0_i32_0 = arith.constant 0 : i32
    %c0_i32_1 = arith.constant 0 : i32
    return %c0_i32, %c0_i32_0 : i32, i32
  }
  func.func @transform_2(%arg0: i32) -> (i32, i32) {
    %c0_i32 = arith.constant 0 : i32
    %c0_i32_0 = arith.constant 0 : i32
    %c0_i32_1 = arith.constant 0 : i32
    return %c0_i32, %c0_i32_0 : i32, i32
  }
  func.func @transform_3(%arg0: i32) -> (i32, i32) {
    %c0_i32 = arith.constant 0 : i32
    %c0_i32_0 = arith.constant 0 : i32
    %c0_i32_1 = arith.constant 0 : i32
    return %c0_i32, %c0_i32_0 : i32, i32
  }
  func.func @transform_4(%arg0: i32) -> (i32, i32) {
    %c0_i32 = arith.constant 0 : i32
    %c0_i32_0 = arith.constant 0 : i32
    %c0_i32_1 = arith.constant 0 : i32
    return %c0_i32, %c0_i32_0 : i32, i32
  }
  func.func @transform_5(%arg0: i32) -> (i32, i32) {
    %c0_i32 = arith.constant 0 : i32
    %c0_i32_0 = arith.constant 0 : i32
    return %arg0, %c0_i32 : i32, i32
  }
}

</mosaic_0001>

<llo_original>
// kernel: tpu_custom_call.1
$region0: #{tpu_custom_call.1}
  #allocation0 [shape = 'u32[]', space=smem, size = 0x4, offset = 0x4, fixed_abs, tag = 'smem constant byte address 0x4 - core index']
  #allocation1 [shape = 'u32[144,128]{1,0:T(1,128)}', space=vmem, size = 0x12000, scoped, tag = 'internal scratch']
  %s0 = inlined_call_operand.hbm [shape: f32[16,36], index: 0, kind: input, shape index: {}]
  %s1 = inlined_call_operand.hbm [shape: f32[12,128], index: 1, kind: input, shape index: {}]
  %s2 = inlined_call_operand.hbm [shape: f32[128,128], index: 2, kind: input, shape index: {}]
  %s3 = inlined_call_operand.hbm [shape: f32[128,128], index: 3, kind: input, shape index: {}]
  %s4 = inlined_call_operand.vmem [shape: f32[1,128], index: 4, kind: input, shape index: {}]
  %s5 = inlined_call_operand.hbm [shape: f32[16,128], index: 5, kind: output, shape index: {}]
  %s6 = sld [smem:[#allocation0]]
  $region69: #{tpu_custom_call.1} parent=0
    _
  %s8 = ssub.s32 1, %s6
  %s9 = scalar_select 0, %s8, %s6
  $region1: #{tpu_custom_call.1} parent=0
    #allocation2 [shape = 'u8[8192]{0}', space=vmem, size = 0x2000, scoped, tag = 'input window, operand 0']
    #allocation3 [shape = 's32[2]{0}', space=sflag, size = 0x8, scoped, tag = 'scoped memory for tpu_custom_call.1']
    #allocation4 [shape = 's32[2]{0}', space=sflag, size = 0x8, scoped, tag = 'scoped memory for tpu_custom_call.1']
    #allocation5 [shape = 'u8[8192]{0}', space=vmem, size = 0x2000, scoped, tag = 'input window, operand 1, single buffered']
    #allocation6 [shape = 's32[1]{0}', space=sflag, size = 0x4, scoped, tag = 'scoped memory for tpu_custom_call.1']
    #allocation7 [shape = 'u8[65536]{0}', space=vmem, size = 0x10000, scoped, tag = 'input window, operand 2, single buffered']
    #allocation8 [shape = 'u8[65536]{0}', space=vmem, size = 0x10000, scoped, tag = 'input window, operand 3, single buffered']
    #allocation9 [shape = 's32[1]{0}', space=sflag, size = 0x4, scoped, tag = 'scoped memory for tpu_custom_call.1']
    #allocation10 [shape = 'u8[8192]{0}', space=vmem, size = 0x2000, scoped, tag = 'output window, operand 0']
    %10 = vsyncpa [#allocation3], 0
    %s11 = scalar_lea.sflag [#allocation3], 1
    %12 = vsyncpa %s11, 0
    %13 = vsyncpa [#allocation6], 0
    %14 = vsyncpa [#allocation9], 0
    %15 = vsyncpa [#allocation4], 0
    %s16 = scalar_lea.sflag [#allocation4], 1
    %17 = vsyncpa %s16, 0
    loop: start=0, step=1, limit=4
    $region2: #{tpu_custom_call.1} parent=1 // loop_pre_header
      _
    $region3: #{tpu_custom_call.1} parent=1 // loop_header
      %s19 = sphi 0, %s23
      %p20 = scmp.ge.s32.totalorder %s19, 4
      %s29 = sphi 0, %s31
      %s32 = sphi 0, %s29
      %s33 = sphi 0, %s32
      %s49 = sphi 0, %s33
      %s53 = sphi 0, %s53
      %s55 = sphi 0, %s53
      %s56 = sphi 0, %s55
      %s70 = sphi 0, %s56
      %s74 = sphi 0, %s74
      %s76 = sphi 0, %s74
      %s77 = sphi 0, %s76
      %s91 = sphi 0, %s77
      %s95 = sphi 0, %s95
      %s97 = sphi 0, %s95
      %s98 = sphi 0, %s97
      %s112 = sphi 0, %s98
      %s116 = sphi 0, %s116
      %s118 = sphi 0, %s116
      %s119 = sphi 0, %s118
      %s133 = sphi 0, %s119
      %s139 = sphi 0, %s141
      %s142 = sphi 0, %s139
      %s143 = sphi 0, %s142
      %s159 = sphi 0, %s143
    $region4: #{tpu_custom_call.1} parent=1 // loop_header_branch
      %22 = sbr.rel (%p20) target = $region8
    $region5: #{tpu_custom_call.1} parent=1 // loop_body
      %s24 = ssub.s32 %s19, 1
      %s25 = ssub.s32 %s19, 2
      %s26 = sadd.s32 %s19, 1
      %s27 = ssub.s32 %s19, %s26
      %p28 = scmp.eq.s32.totalorder %s27, 0
      %s30 = sadd.s32 %s29, 1
      %s31 = scalar_select %p28, %s29, %s30
      %p34 = pneg %p28
      %p35 = scmp.eq.s32.totalorder %s19, 1
      %p36 = por %p34, %p35
      %p37 = scmp.ne.s32.totalorder %s29, %s32
      %p38 = scmp.eq.s32.totalorder %s19, 0
      %p39 = por %p37, %p38
      %p40 = scmp.ne.s32.totalorder %s29, %s32
      %p41 = scmp.eq.s32.totalorder %s24, 1
      %p42 = por %p40, %p41
      %p43 = scmp.ne.s32.totalorder %s32, %s33
      %p44 = scmp.eq.s32.totalorder %s24, 0
      %p45 = por %p43, %p44
      %p46 = scmp.ne.s32.totalorder %s32, %s33
      %p47 = scmp.eq.s32.totalorder %s25, 1
      %p48 = por %p46, %p47
      %p50 = scmp.ne.s32.totalorder %s33, %s49
      %p51 = scmp.eq.s32.totalorder %s25, 0
      %p52 = por %p50, %p51
      %s54 = sadd.s32 %s53, 1
      %p57 = scmp.eq.s32.totalorder %s19, 1
      %p58 = scmp.ne.s32.totalorder %s53, %s55
      %p59 = scmp.eq.s32.totalorder %s19, 0
      %p60 = por %p58, %p59
      %p61 = scmp.ne.s32.totalorder %s53, %s55
      %p62 = scmp.eq.s32.totalorder %s24, 1
      %p63 = por %p61, %p62
      %p64 = scmp.ne.s32.totalorder %s55, %s56
      %p65 = scmp.eq.s32.totalorder %s24, 0
      %p66 = por %p64, %p65
      %p67 = scmp.ne.s32.totalorder %s55, %s56
      %p68 = scmp.eq.s32.totalorder %s25, 1
      %p69 = por %p67, %p68
      %p71 = scmp.ne.s32.totalorder %s56, %s70
      %p72 = scmp.eq.s32.totalorder %s25, 0
      %p73 = por %p71, %p72
      %s75 = sadd.s32 %s74, 1
      %p78 = scmp.eq.s32.totalorder %s19, 1
      %p79 = scmp.ne.s32.totalorder %s74, %s76
      %p80 = scmp.eq.s32.totalorder %s19, 0
      %p81 = por %p79, %p80
      %p82 = scmp.ne.s32.totalorder %s74, %s76
      %p83 = scmp.eq.s32.totalorder %s24, 1
      %p84 = por %p82, %p83
      %p85 = scmp.ne.s32.totalorder %s76, %s77
      %p86 = scmp.eq.s32.totalorder %s24, 0
      %p87 = por %p85, %p86
      %p88 = scmp.ne.s32.totalorder %s76, %s77
      %p89 = scmp.eq.s32.totalorder %s25, 1
      %p90 = por %p88, %p89
      %p92 = scmp.ne.s32.totalorder %s77, %s91
      %p93 = scmp.eq.s32.totalorder %s25, 0
      %p94 = por %p92, %p93
      %s96 = sadd.s32 %s95, 1
      %p99 = scmp.eq.s32.totalorder %s19, 1
      %p100 = scmp.ne.s32.totalorder %s95, %s97
      %p101 = scmp.eq.s32.totalorder %s19, 0
      %p102 = por %p100, %p101
      %p103 = scmp.ne.s32.totalorder %s95, %s97
      %p104 = scmp.eq.s32.totalorder %s24, 1
      %p105 = por %p103, %p104
      %p106 = scmp.ne.s32.totalorder %s97, %s98
      %p107 = scmp.eq.s32.totalorder %s24, 0
      %p108 = por %p106, %p107
      %p109 = scmp.ne.s32.totalorder %s97, %s98
      %p110 = scmp.eq.s32.totalorder %s25, 1
      %p111 = por %p109, %p110
      %p113 = scmp.ne.s32.totalorder %s98, %s112
      %p114 = scmp.eq.s32.totalorder %s25, 0
      %p115 = por %p113, %p114
      %s117 = sadd.s32 %s116, 1
      %p120 = scmp.eq.s32.totalorder %s19, 1
      %p121 = scmp.ne.s32.totalorder %s116, %s118
      %p122 = scmp.eq.s32.totalorder %s19, 0
      %p123 = por %p121, %p122
      %p124 = scmp.ne.s32.totalorder %s116, %s118
      %p125 = scmp.eq.s32.totalorder %s24, 1
      %p126 = por %p124, %p125
      %p127 = scmp.ne.s32.totalorder %s118, %s119
      %p128 = scmp.eq.s32.totalorder %s24, 0
      %p129 = por %p127, %p128
      %p130 = scmp.ne.s32.totalorder %s118, %s119
      %p131 = scmp.eq.s32.totalorder %s25, 1
      %p132 = por %p130, %p131
      %p134 = scmp.ne.s32.totalorder %s119, %s133
      %p135 = scmp.eq.s32.totalorder %s25, 0
      %p136 = por %p134, %p135
      %s137 = ssub.s32 %s19, %s26
      %p138 = scmp.eq.s32.totalorder %s137, 0
      %s140 = sadd.s32 %s139, 1
      %s141 = scalar_select %p138, %s139, %s140
      %p144 = pneg %p138
      %p145 = scmp.eq.s32.totalorder %s19, 1
      %p146 = por %p144, %p145
      %p147 = scmp.ne.s32.totalorder %s139, %s142
      %p148 = scmp.eq.s32.totalorder %s19, 0
      %p149 = por %p147, %p148
      %p150 = scmp.ne.s32.totalorder %s139, %s142
      %p151 = scmp.eq.s32.totalorder %s24, 1
      %p152 = por %p150, %p151
      %p153 = scmp.ne.s32.totalorder %s142, %s143
      %p154 = scmp.eq.s32.totalorder %s24, 0
      %p155 = por %p153, %p154
      %p156 = scmp.ne.s32.totalorder %s142, %s143
      %p157 = scmp.eq.s32.totalorder %s25, 1
      %p158 = por %p156, %p157
      %p160 = scmp.ne.s32.totalorder %s143, %s159
      %p161 = scmp.eq.s32.totalorder %s25, 0
      %p162 = por %p160, %p161
      %p163 = scmp.le.s32.totalorder 1, %s19
      %p164 = scmp.lt.s32.totalorder %s19, 3
      %p165 = pnand %p163, %p164
      %p166 = pneg %p165
      // Predicated region
      $region9: #{tpu_custom_call.1} parent=5 // pred_check
        _
      $region10: #{tpu_custom_call.1} parent=5 // pred_check_branch
        %168 = sbr.rel (%p165) target = $region12
      $region11: #{tpu_custom_call.1} parent=5 // pred_region
        %s169 = ssub.s32 %s19, 1
        // Predicated region
        $region13: #{tpu_custom_call.1} parent=11 // pred_check
          %p170 = pneg %p66
        $region14: #{tpu_custom_call.1} parent=11 // pred_check_branch
          %172 = sbr.rel (%p170) target = $region16
        $region15: #{tpu_custom_call.1} parent=11 // pred_region
          %s174 = ssub.s32 256, 256
          %175 = vsyncadd [#allocation6], %s174
          %s176 = sshll.u32 [#allocation5], 4
          %s177 = int_to_ptr.vmem [resolvable:$true] %s176
          %182 = dma.hbm_to_vmem [thread:$0]  %s1, 256, %s177, [#allocation6], 128, 128, 8
        $region16: #{tpu_custom_call.1} parent=11 // pred_fallthru
          _
        // Predicated region
        $region17: #{tpu_custom_call.1} parent=11 // pred_check
          %p183 = pneg %p87
        $region18: #{tpu_custom_call.1} parent=11 // pred_check_branch
          %185 = sbr.rel (%p183) target = $region20
        $region19: #{tpu_custom_call.1} parent=11 // pred_region
          %s187 = ssub.s32 2048, 2048
          %188 = vsyncadd [#allocation6], %s187
          %s189 = sshll.u32 [#allocation7], 4
          %s190 = int_to_ptr.vmem [resolvable:$true] %s189
          %195 = dma.hbm_to_vmem [thread:$0]  %s2, 2048, %s190, [#allocation6], 128, 128, 8
        $region20: #{tpu_custom_call.1} parent=11 // pred_fallthru
          _
        // Predicated region
        $region21: #{tpu_custom_call.1} parent=11 // pred_check
          %p196 = pneg %p108
        $region22: #{tpu_custom_call.1} parent=11 // pred_check_branch
          %198 = sbr.rel (%p196) target = $region24
        $region23: #{tpu_custom_call.1} parent=11 // pred_region
          %s200 = ssub.s32 2048, 2048
          %201 = vsyncadd [#allocation9], %s200
          %s202 = sshll.u32 [#allocation8], 4
          %s203 = int_to_ptr.vmem [resolvable:$true] %s202
          %208 = dma.hbm_to_vmem [thread:$0]  %s3, 2048, %s203, [#allocation9], 128, 128, 8
        $region24: #{tpu_custom_call.1} parent=11 // pred_fallthru
          _
        // Predicated region
        $region25: #{tpu_custom_call.1} parent=11 // pred_check
          %p209 = pneg %p129
        $region26: #{tpu_custom_call.1} parent=11 // pred_check_branch
          %211 = sbr.rel (%p209) target = $region28
        $region27: #{tpu_custom_call.1} parent=11 // pred_region
          _
        $region28: #{tpu_custom_call.1} parent=11 // pred_fallthru
          _
      $region12: #{tpu_custom_call.1} parent=5 // pred_fallthru
        _
      %p212 = scmp.lt.s32.totalorder %s19, 2
      // Predicated region
      $region29: #{tpu_custom_call.1} parent=5 // pred_check
        %p213 = pneg %p212
      $region30: #{tpu_custom_call.1} parent=5 // pred_check_branch
        %215 = sbr.rel (%p213) target = $region32
      $region31: #{tpu_custom_call.1} parent=5 // pred_region
        // Predicated region
        $region33: #{tpu_custom_call.1} parent=31 // pred_check
          %p216 = pneg %p39
        $region34: #{tpu_custom_call.1} parent=31 // pred_check_branch
          %218 = sbr.rel (%p216) target = $region36
        $region35: #{tpu_custom_call.1} parent=31 // pred_region
          %s219 = sand.u32 %s29, 1
          %s220 = scalar_lea.sflag [#allocation3], %s219
          %s221 = sand.u32 %s29, 1
          %s222 = smul.addr %s221, 8
          %s223 = scalar_lea.vmem [#allocation2], %s222
          %s225 = ssub.s32 128, 128
          %226 = vsyncadd %s220, %s225
          %s227 = smul.addr %s19, 128
          %s228 = scalar_lea.hbm %s0, %s227
          %s230 = sshll.u32 %s223, 4
          %s231 = int_to_ptr.vmem [resolvable:$true] %s230
          %233 = dma.hbm_to_vmem [thread:$0]  %s228, 128, %s231, %s220
        $region36: #{tpu_custom_call.1} parent=31 // pred_fallthru
          _
      $region32: #{tpu_custom_call.1} parent=5 // pred_fallthru
        _
      %p234 = scmp.le.s32.totalorder 1, %s19
      %p235 = scmp.lt.s32.totalorder %s19, 3
      %p236 = pnand %p234, %p235
      %p237 = pneg %p236
      // Predicated region
      $region37: #{tpu_custom_call.1} parent=5 // pred_check
        _
      $region38: #{tpu_custom_call.1} parent=5 // pred_check_branch
        %239 = sbr.rel (%p236) target = $region40
      $region39: #{tpu_custom_call.1} parent=5 // pred_region
        %s240 = ssub.s32 %s19, 1
        %s241 = sand.u32 %s32, 1
        %s242 = scalar_lea.sflag [#allocation3], %s241
        %s243 = sand.u32 %s32, 1
        %s244 = smul.addr %s243, 8
        %s245 = scalar_lea.vmem [#allocation2], %s244
        // Predicated region
        $region41: #{tpu_custom_call.1} parent=39 // pred_check
          %p246 = pneg %p45
        $region42: #{tpu_custom_call.1} parent=39 // pred_check_branch
          %248 = sbr.rel (%p246) target = $region44
        $region43: #{tpu_custom_call.1} parent=39 // pred_region
          %249 = dma.done %s242, 128
        $region44: #{tpu_custom_call.1} parent=39 // pred_fallthru
          _
        // Predicated region
        $region45: #{tpu_custom_call.1} parent=39 // pred_check
          %p250 = pneg %p66
        $region46: #{tpu_custom_call.1} parent=39 // pred_check_branch
          %252 = sbr.rel (%p250) target = $region48
        $region47: #{tpu_custom_call.1} parent=39 // pred_region
          %253 = dma.done [#allocation6], 256
        $region48: #{tpu_custom_call.1} parent=39 // pred_fallthru
          _
        // Predicated region
        $region49: #{tpu_custom_call.1} parent=39 // pred_check
          %p254 = pneg %p87
        $region50: #{tpu_custom_call.1} parent=39 // pred_check_branch
          %256 = sbr.rel (%p254) target = $region52
        $region51: #{tpu_custom_call.1} parent=39 // pred_region
          %257 = dma.done [#allocation6], 2048
        $region52: #{tpu_custom_call.1} parent=39 // pred_fallthru
          _
        // Predicated region
        $region53: #{tpu_custom_call.1} parent=39 // pred_check
          %p258 = pneg %p108
        $region54: #{tpu_custom_call.1} parent=39 // pred_check_branch
          %260 = sbr.rel (%p258) target = $region56
        $region55: #{tpu_custom_call.1} parent=39 // pred_region
          %261 = dma.done [#allocation9], 2048
        $region56: #{tpu_custom_call.1} parent=39 // pred_fallthru
          _
        %s262 = sand.u32 %s32, 1
        %s263 = scalar_lea.sflag [#allocation3], %s262
        %s264 = sand.u32 %s32, 1
        %s265 = smul.addr %s264, 8
        %s266 = scalar_lea.vmem [#allocation2], %s265
        %p267 = pneg %p45
        %p268 = pneg %p42
        %p269 = pneg %p66
        %p270 = pneg %p63
        %p271 = pneg %p87
        %p272 = pneg %p84
        %p273 = pneg %p108
        %p274 = pneg %p105
        %p275 = pneg %p129
        %p276 = pneg %p126
        %p277 = pneg %p155
        %p278 = pneg %p152
        %s279 = sand.u32 %s142, 1
        %s280 = scalar_lea.sflag [#allocation4], %s279
        %s281 = sand.u32 %s142, 1
        %s282 = smul.addr %s281, 8
        %s283 = scalar_lea.vmem [#allocation10], %s282
        %v284 = vlaneseq
        %v285 = vand.u32 %v284, 127
        %vm286 = vcmp.eq.s32.totalorder %v285, 0
        %v287 = vsel %vm286, 1.0, 0.0
        %v288 = vld [vmem:[%s245] sm:$0xff]
        %v289 = vmul.f32 %v288, 0.5
        %v290 = vand.u32 2147483647, %v289
        %vm291 = vcmp.le.f32.partialorder %v290, 0.7853982
        %vm292 = vcmp.lt.s32.totalorder %v289, 0
        %v293 = vand.u32 %v289, 2139095040
        %v294 = vshrl.u32 %v293, 23
        %v295 = vsub.s32 %v294, 127
        %v296 = vand.u32 2147483647, %v289
        %v297 = vand.u32 %v296, 8388607
        %v298 = vor.u32 %v297, 8388608
        %v299 = vsub.s32 0, %v298
        %v300 = vadd.s32 %v295, 1
        %vm301 = vcmp.gt.s32.totalorder %v300, 0
        %v302 = vsel %vm301, %v300, 0
        %v303 = vshrl.u32 %v302, 5
        %v304 = vand.u32 %v302, 31
        %v305 = vsub.s32 32, %v304
        %v306 = vshrl.u32 683565275, %v305
        %v307 = vshll.u32 683565275, %v304
        %v308 = vshrl.u32 2475754826, %v305
        %v309 = vor.u32 %v307, %v308
        %v310 = vshll.u32 2475754826, %v304
        %v311 = vshrl.u32 2131351028, %v305
        %v312 = vor.u32 %v310, %v311
        %v313 = vshll.u32 2131351028, %v304
        %v314 = vshrl.u32 2102212464, %v305
        %v315 = vor.u32 %v313, %v314
        %v316 = vshll.u32 2102212464, %v304
        %v317 = vshrl.u32 920167782, %v305
        %v318 = vor.u32 %v316, %v317
        %v319 = vshll.u32 920167782, %v304
        %v320 = vshrl.u32 1326507024, %v305
        %v321 = vor.u32 %v319, %v320
        %vm322 = vcmp.lt.s32.totalorder %v303, 1
        %vm323 = vcmp.lt.s32.totalorder %v303, 2
        %vm324 = vcmp.lt.s32.totalorder %v303, 3
        %vm325 = vcmp.lt.s32.totalorder %v303, 4
        %v326 = vsel %vm322, %v306, %v309
        %v327 = vsel %vm325, %v315, 2102212464
        %v328 = vsel %vm324, %v312, %v327
        %v329 = vsel %vm323, %v326, %v328
        %v330 = vsel %vm322, %v309, %v312
        %v331 = vsel %vm325, %v318, 920167782
        %v332 = vsel %vm324, %v315, %v331
        %v333 = vsel %vm323, %v330, %v332
        %v334 = vsel %vm322, %v312, %v315
        %v335 = vsel %vm325, %v321, 1326507024
        %v336 = vsel %vm324, %v318, %v335
        %v337 = vsel %vm323, %v334, %v336
        %v338 = vshll.u32 %v298, 8
        %v339 = vmul.u32.u64.compose %v338, %v337
        %v340 = vextract.low.u32 %v339
        %v341 = vextract.high.u32 %v339
        %v342 = vmul.u32.u64.compose %v338, %v333
        %v343 = vextract.low.u32 %v342
        %v344 = vextract.high.u32 %v342
        %v345 = vmul.u32 %v338, %v329
        %v346 = vadd.s32 %v341, %v343
        %vm347 = vc.u32 %v341, %v343
        %v348 = vadd.s32 %v344, 1
        %v349 = vsel %vm347, %v348, %v344
        %v350 = vadd.s32 %v345, %v349
        %v351 = vadd.s32 %v350, 536870912
        %v352 = vshrl.u32 %v351, 30
        %v353 = vshll.u32 %v352, 30
        %v354 = vsub.s32 %v350, %v353
        %vm355 = vcmp.lt.s32.totalorder %v354, 0
        %v356 = vsub.s32 0, %v354
        %v357 = vsel %vm355, %v356, %v354
        %v358 = vclz %v357
        %v359 = vsub.s32 %v358, 2
        %vm360 = vcmp.gt.s32.totalorder 0, %v359
        %v361 = vsel %vm360, 0, %v359
        %v362 = vsub.s32 32, %v361
        %v363 = vshll.u32 %v354, %v361
        %v364 = vshrl.u32 %v346, %v362
        %v365 = vor.u32 %v363, %v364
        %v366 = vsub.s32 4294967266, %v361
        %v367 = vadd.s32 %v366, 127
        %v368 = vshll.u32 %v367, 23
        %v369 = vor.u32 4788187, %v368
        %v370 = vand.u32 2147483647, %v369
        %v372 = vcvt.s32.f32 %v365
        %v373 = vmul.f32 %v372, %v370
        %v374 = vxor.u32 %v373, 2147483648
        %v375 = vsel %vm292, %v374, %v373
        %v376 = vsub.s32 4, %v352
        %v377 = vsel %vm292, %v376, %v352
        %v378 = vsel %vm291, %v289, %v375
        %v379 = vsel %vm291, 0, %v377
        %v380 = vcosq.f32.pop %v378
        %v381 = vsinq.f32.pop %v378
        %vm382 = vweird.f32 %v289
        %v383 = vand.u32 %v379, 3
        %vm384 = vcmp.lt.s32.totalorder %v383, 2
        %vm385 = vcmp.eq.s32.totalorder %v383, 0
        %v386 = vxor.u32 %v381, 2147483648
        %v387 = vsel %vm385, %v380, %v386
        %vm388 = vcmp.eq.s32.totalorder %v383, 2
        %v389 = vxor.u32 %v380, 2147483648
        %v390 = vsel %vm388, %v389, %v381
        %v391 = vsel %vm384, %v387, %v390
        %v392 = vsel %vm382, nan, %v391
        %v393 = vand.u32 2147483647, %v289
        %vm394 = vcmp.le.f32.partialorder %v393, 0.7853982
        %vm395 = vcmp.lt.s32.totalorder %v289, 0
        %v396 = vand.u32 %v289, 2139095040
        %v397 = vshrl.u32 %v396, 23
        %v398 = vsub.s32 %v397, 127
        %v399 = vand.u32 2147483647, %v289
        %v400 = vand.u32 %v399, 8388607
        %v401 = vor.u32 %v400, 8388608
        %v402 = vsub.s32 0, %v401
        %v403 = vadd.s32 %v398, 1
        %vm404 = vcmp.gt.s32.totalorder %v403, 0
        %v405 = vsel %vm404, %v403, 0
        %v406 = vshrl.u32 %v405, 5
        %v407 = vand.u32 %v405, 31
        %v408 = vsub.s32 32, %v407
        %v409 = vshrl.u32 683565275, %v408
        %v410 = vshll.u32 683565275, %v407
        %v411 = vshrl.u32 2475754826, %v408
        %v412 = vor.u32 %v410, %v411
        %v413 = vshll.u32 2475754826, %v407
        %v414 = vshrl.u32 2131351028, %v408
        %v415 = vor.u32 %v413, %v414
        %v416 = vshll.u32 2131351028, %v407
        %v417 = vshrl.u32 2102212464, %v408
        %v418 = vor.u32 %v416, %v417
        %v419 = vshll.u32 2102212464, %v407
        %v420 = vshrl.u32 920167782, %v408
        %v421 = vor.u32 %v419, %v420
        %v422 = vshll.u32 920167782, %v407
        %v423 = vshrl.u32 1326507024, %v408
        %v424 = vor.u32 %v422, %v423
        %vm425 = vcmp.lt.s32.totalorder %v406, 1
        %vm426 = vcmp.lt.s32.totalorder %v406, 2
        %vm427 = vcmp.lt.s32.totalorder %v406, 3
        %vm428 = vcmp.lt.s32.totalorder %v406, 4
        %v429 = vsel %vm425, %v409, %v412
        %v430 = vsel %vm428, %v418, 2102212464
        %v431 = vsel %vm427, %v415, %v430
        %v432 = vsel %vm426, %v429, %v431
        %v433 = vsel %vm425, %v412, %v415
        %v434 = vsel %vm428, %v421, 920167782
        %v435 = vsel %vm427, %v418, %v434
        %v436 = vsel %vm426, %v433, %v435
        %v437 = vsel %vm425, %v415, %v418
        %v438 = vsel %vm428, %v424, 1326507024
        %v439 = vsel %vm427, %v421, %v438
        %v440 = vsel %vm426, %v437, %v439
        %v441 = vshll.u32 %v401, 8
        %v442 = vmul.u32.u64.compose %v441, %v440
        %v443 = vextract.low.u32 %v442
        %v444 = vextract.high.u32 %v442
        %v445 = vmul.u32.u64.compose %v441, %v436
        %v446 = vextract.low.u32 %v445
        %v447 = vextract.high.u32 %v445
        %v448 = vmul.u32 %v441, %v432
        %v449 = vadd.s32 %v444, %v446
        %vm450 = vc.u32 %v444, %v446
        %v451 = vadd.s32 %v447, 1
        %v452 = vsel %vm450, %v451, %v447
        %v453 = vadd.s32 %v448, %v452
        %v454 = vadd.s32 %v453, 536870912
        %v455 = vshrl.u32 %v454, 30
        %v456 = vshll.u32 %v455, 30
        %v457 = vsub.s32 %v453, %v456
        %vm458 = vcmp.lt.s32.totalorder %v457, 0
        %v459 = vsub.s32 0, %v457
        %v460 = vsel %vm458, %v459, %v457
        %v461 = vclz %v460
        %v462 = vsub.s32 %v461, 2
        %vm463 = vcmp.gt.s32.totalorder 0, %v462
        %v464 = vsel %vm463, 0, %v462
        %v465 = vsub.s32 32, %v464
        %v466 = vshll.u32 %v457, %v464
        %v467 = vshrl.u32 %v449, %v465
        %v468 = vor.u32 %v466, %v467
        %v469 = vsub.s32 4294967266, %v464
        %v470 = vadd.s32 %v469, 127
        %v471 = vshll.u32 %v470, 23
        %v472 = vor.u32 4788187, %v471
        %v473 = vand.u32 2147483647, %v472
        %v475 = vcvt.s32.f32 %v468
        %v476 = vmul.f32 %v475, %v473
        %v477 = vxor.u32 %v476, 2147483648
        %v478 = vsel %vm395, %v477, %v476
        %v479 = vsub.s32 4, %v455
        %v480 = vsel %vm395, %v479, %v455
        %v481 = vsel %vm394, %v289, %v478
        %v482 = vsel %vm394, 0, %v480
        %v483 = vcosq.f32.pop %v481
        %v484 = vsinq.f32.pop %v481
        %vm485 = vweird.f32 %v289
        %v486 = vadd.s32 %v482, 3
        %v487 = vand.u32 %v486, 3
        %vm488 = vcmp.lt.s32.totalorder %v487, 2
        %vm489 = vcmp.eq.s32.totalorder %v487, 0
        %v490 = vxor.u32 %v484, 2147483648
        %v491 = vsel %vm489, %v483, %v490
        %vm492 = vcmp.eq.s32.totalorder %v487, 2
        %v493 = vxor.u32 %v483, 2147483648
        %v494 = vsel %vm492, %v493, %v484
        %v495 = vsel %vm488, %v491, %v494
        %v496 = vsel %vm485, nan, %v495
        %v497 = vld [vmem:[#allocation5] sm:$0x1]
        %v498 = vld [vmem:[#allocation5 + $0x1] sm:$0x1]
        %v499 = vld [vmem:[#allocation5 + $0x2] sm:$0x1]
        %v500 = vld [vmem:[#allocation5 + $0x3] sm:$0x1]
        %v501 = vld [vmem:[#allocation5 + $0x4] sm:$0x1]
        %v502 = vld [vmem:[#allocation5 + $0x5] sm:$0x1]
        %v503 = vld [vmem:[#allocation5 + $0x6] sm:$0x1]
        %v504 = vld [vmem:[#allocation5 + $0x7] sm:$0x1]
        %v505 = vld [vmem:[#allocation5 + $0x8] sm:$0x1]
        %v506 = vld [vmem:[#allocation5 + $0x9] sm:$0x1]
        %v507 = vld [vmem:[#allocation5 + $0xa] sm:$0x1]
        %v508 = vld [vmem:[#allocation5 + $0xb] sm:$0x1]
        %vm509 = vcmp.lt.f32.partialorder %v497, 0.0
        %vm510 = vcmp.lt.f32.partialorder %v498, 0.0
        %vm511 = vcmp.lt.f32.partialorder %v499, 0.0
        %vm512 = vcmp.lt.f32.partialorder %v500, 0.0
        %vm513 = vcmp.lt.f32.partialorder %v501, 0.0
        %vm514 = vcmp.lt.f32.partialorder %v502, 0.0
        %v515 = vld [vmem:[#allocation7] sm:$0xff]
        %v516 = vld [vmem:[#allocation7 + $0x8] sm:$0xff]
        %v517 = vld [vmem:[#allocation7 + $0x10] sm:$0xff]
        %v518 = vld [vmem:[#allocation7 + $0x18] sm:$0xff]
        %v519 = vld [vmem:[#allocation7 + $0x20] sm:$0xff]
        %v520 = vld [vmem:[#allocation7 + $0x28] sm:$0xff]
        %v521 = vld [vmem:[#allocation7 + $0x30] sm:$0xff]
        %v522 = vld [vmem:[#allocation7 + $0x38] sm:$0xff]
        %v523 = vld [vmem:[#allocation7 + $0x40] sm:$0xff]
        %v524 = vld [vmem:[#allocation7 + $0x48] sm:$0xff]
        %v525 = vld [vmem:[#allocation7 + $0x50] sm:$0xff]
        %v526 = vld [vmem:[#allocation7 + $0x58] sm:$0xff]
        %v527 = vld [vmem:[#allocation7 + $0x60] sm:$0xff]
        %v528 = vld [vmem:[#allocation7 + $0x68] sm:$0xff]
        %v529 = vld [vmem:[#allocation7 + $0x70] sm:$0xff]
        %v530 = vld [vmem:[#allocation7 + $0x78] sm:$0xff]
        %531 = vrot.lane.b32.xlu0 %v287, 96
        %v532 = vpop.permute.xlu0 %531
        %533 = vrot.lane.b32.xlu0 %v287, 32
        %v534 = vpop.permute.xlu0 %533
        %v535 = vsel %vm509, 1, 0
        %v536 = vlaneseq
        %v537 = vshrl.u32 %v536, 7
        %v538 = vsub.s32 0, %v537
        %v539 = vrot.slane %v535, %v538
        %vm540 = vcmp.eq.s32.totalorder %v539, 1
        %v541 = vsel %vm540, %v532, %v534
        %543 = vset.pattern.permute.xlu0 0
        %544 = vperm.xlu0 %543, %v392
        %v545 = vpop.permute.xlu0 %544
        %v547 = vmul.f32 %v545, %v287
        %549 = vset.pattern.permute.xlu0 0
        %550 = vperm.xlu0 %549, %v496
        %v551 = vpop.permute.xlu0 %550
        %v553 = vlaneseq
        %v554 = vshrl.u32 %v553, 7
        %v555 = vsub.s32 0, %v554
        %v556 = vrot.slane %v497, %v555
        %v557 = vmul.f32 %v551, %v556
        %v558 = vmul.f32 %v557, %v541
        %v559 = vadd.f32 %v547, %v558
        %560 = vset.pattern.permute.xlu0 18
        %561 = vperm.xlu0 %560, %v392
        %v562 = vpop.permute.xlu0 %561
        %v564 = vmul.f32 %v562, %v559
        %565 = vset.pattern.permute.xlu0 18
        %566 = vperm.xlu0 %565, %v496
        %v567 = vpop.permute.xlu0 %566
        %v569 = vlaneseq
        %v570 = vshrl.u32 %v569, 7
        %v571 = vsub.s32 0, %v570
        %v572 = vrot.slane %v503, %v571
        %v573 = vmul.f32 %v567, %v572
        %574 = vrot.lane.b32.xlu0 %v559, 64
        %v575 = vpop.permute.xlu0 %574
        %v576 = vmul.f32 %v573, %v575
        %v577 = vadd.f32 %v564, %v576
        %578 = vrot.lane.b32.xlu0 %v577, 112
        %v579 = vpop.permute.xlu0 %578
        %580 = vrot.lane.b32.xlu0 %v577, 16
        %v581 = vpop.permute.xlu0 %580
        %v582 = vsel %vm510, 1, 0
        %v583 = vlaneseq
        %v584 = vshrl.u32 %v583, 7
        %v585 = vsub.s32 0, %v584
        %v586 = vrot.slane %v582, %v585
        %vm587 = vcmp.eq.s32.totalorder %v586, 1
        %v588 = vsel %vm587, %v579, %v581
        %589 = vset.pattern.permute.xlu0 1
        %590 = vperm.xlu0 %589, %v392
        %v591 = vpop.permute.xlu0 %590
        %v593 = vmul.f32 %v591, %v577
        %594 = vset.pattern.permute.xlu0 1
        %595 = vperm.xlu0 %594, %v496
        %v596 = vpop.permute.xlu0 %595
        %v598 = vlaneseq
        %v599 = vshrl.u32 %v598, 7
        %v600 = vsub.s32 0, %v599
        %v601 = vrot.slane %v498, %v600
        %v602 = vmul.f32 %v596, %v601
        %v603 = vmul.f32 %v602, %v588
        %v604 = vadd.f32 %v593, %v603
        %605 = vset.pattern.permute.xlu0 19
        %606 = vperm.xlu0 %605, %v392
        %v607 = vpop.permute.xlu0 %606
        %v609 = vmul.f32 %v607, %v604
        %610 = vset.pattern.permute.xlu0 19
        %611 = vperm.xlu0 %610, %v496
        %v612 = vpop.permute.xlu0 %611
        %v614 = vlaneseq
        %v615 = vshrl.u32 %v614, 7
        %v616 = vsub.s32 0, %v615
        %v617 = vrot.slane %v504, %v616
        %v618 = vmul.f32 %v612, %v617
        %619 = vrot.lane.b32.xlu0 %v604, 64
        %v620 = vpop.permute.xlu0 %619
        %v621 = vmul.f32 %v618, %v620
        %v622 = vadd.f32 %v609, %v621
        %623 = vrot.lane.b32.xlu0 %v622, 120
        %v624 = vpop.permute.xlu0 %623
        %625 = vrot.lane.b32.xlu0 %v622, 8
        %v626 = vpop.permute.xlu0 %625
        %v627 = vsel %vm511, 1, 0
        %v628 = vlaneseq
        %v629 = vshrl.u32 %v628, 7
        %v630 = vsub.s32 0, %v629
        %v631 = vrot.slane %v627, %v630
        %vm632 = vcmp.eq.s32.totalorder %v631, 1
        %v633 = vsel %vm632, %v624, %v626
        %634 = vset.pattern.permute.xlu0 2
        %635 = vperm.xlu0 %634, %v392
        %v636 = vpop.permute.xlu0 %635
        %v638 = vmul.f32 %v636, %v622
        %639 = vset.pattern.permute.xlu0 2
        %640 = vperm.xlu0 %639, %v496
        %v641 = vpop.permute.xlu0 %640
        %v643 = vlaneseq
        %v644 = vshrl.u32 %v643, 7
        %v645 = vsub.s32 0, %v644
        %v646 = vrot.slane %v499, %v645
        %v647 = vmul.f32 %v641, %v646
        %v648 = vmul.f32 %v647, %v633
        %v649 = vadd.f32 %v638, %v648
        %650 = vset.pattern.permute.xlu0 20
        %651 = vperm.xlu0 %650, %v392
        %v652 = vpop.permute.xlu0 %651
        %v654 = vmul.f32 %v652, %v649
        %655 = vset.pattern.permute.xlu0 20
        %656 = vperm.xlu0 %655, %v496
        %v657 = vpop.permute.xlu0 %656
        %v659 = vlaneseq
        %v660 = vshrl.u32 %v659, 7
        %v661 = vsub.s32 0, %v660
        %v662 = vrot.slane %v505, %v661
        %v663 = vmul.f32 %v657, %v662
        %664 = vrot.lane.b32.xlu0 %v649, 64
        %v665 = vpop.permute.xlu0 %664
        %v666 = vmul.f32 %v663, %v665
        %v667 = vadd.f32 %v654, %v666
        %668 = vrot.lane.b32.xlu0 %v667, 124
        %v669 = vpop.permute.xlu0 %668
        %670 = vrot.lane.b32.xlu0 %v667, 4
        %v671 = vpop.permute.xlu0 %670
        %v672 = vsel %vm512, 1, 0
        %v673 = vlaneseq
        %v674 = vshrl.u32 %v673, 7
        %v675 = vsub.s32 0, %v674
        %v676 = vrot.slane %v672, %v675
        %vm677 = vcmp.eq.s32.totalorder %v676, 1
        %v678 = vsel %vm677, %v669, %v671
        %679 = vset.pattern.permute.xlu0 3
        %680 = vperm.xlu0 %679, %v392
        %v681 = vpop.permute.xlu0 %680
        %v683 = vmul.f32 %v681, %v667
        %684 = vset.pattern.permute.xlu0 3
        %685 = vperm.xlu0 %684, %v496
        %v686 = vpop.permute.xlu0 %685
        %v688 = vlaneseq
        %v689 = vshrl.u32 %v688, 7
        %v690 = vsub.s32 0, %v689
        %v691 = vrot.slane %v500, %v690
        %v692 = vmul.f32 %v686, %v691
        %v693 = vmul.f32 %v692, %v678
        %v694 = vadd.f32 %v683, %v693
        %695 = vset.pattern.permute.xlu0 21
        %696 = vperm.xlu0 %695, %v392
        %v697 = vpop.permute.xlu0 %696
        %v699 = vmul.f32 %v697, %v694
        %700 = vset.pattern.permute.xlu0 21
        %701 = vperm.xlu0 %700, %v496
        %v702 = vpop.permute.xlu0 %701
        %v704 = vlaneseq
        %v705 = vshrl.u32 %v704, 7
        %v706 = vsub.s32 0, %v705
        %v707 = vrot.slane %v506, %v706
        %v708 = vmul.f32 %v702, %v707
        %709 = vrot.lane.b32.xlu0 %v694, 64
        %v710 = vpop.permute.xlu0 %709
        %v711 = vmul.f32 %v708, %v710
        %v712 = vadd.f32 %v699, %v711
        %713 = vrot.lane.b32.xlu0 %v712, 126
        %v714 = vpop.permute.xlu0 %713
        %715 = vrot.lane.b32.xlu0 %v712, 2
        %v716 = vpop.permute.xlu0 %715
        %v717 = vsel %vm513, 1, 0
        %v718 = vlaneseq
        %v719 = vshrl.u32 %v718, 7
        %v720 = vsub.s32 0, %v719
        %v721 = vrot.slane %v717, %v720
        %vm722 = vcmp.eq.s32.totalorder %v721, 1
        %v723 = vsel %vm722, %v714, %v716
        %724 = vset.pattern.permute.xlu0 4
        %725 = vperm.xlu0 %724, %v392
        %v726 = vpop.permute.xlu0 %725
        %v728 = vmul.f32 %v726, %v712
        %729 = vset.pattern.permute.xlu0 4
        %730 = vperm.xlu0 %729, %v496
        %v731 = vpop.permute.xlu0 %730
        %v733 = vlaneseq
        %v734 = vshrl.u32 %v733, 7
        %v735 = vsub.s32 0, %v734
        %v736 = vrot.slane %v501, %v735
        %v737 = vmul.f32 %v731, %v736
        %v738 = vmul.f32 %v737, %v723
        %v739 = vadd.f32 %v728, %v738
        %740 = vset.pattern.permute.xlu0 22
        %741 = vperm.xlu0 %740, %v392
        %v742 = vpop.permute.xlu0 %741
        %v744 = vmul.f32 %v742, %v739
        %745 = vset.pattern.permute.xlu0 22
        %746 = vperm.xlu0 %745, %v496
        %v747 = vpop.permute.xlu0 %746
        %v749 = vlaneseq
        %v750 = vshrl.u32 %v749, 7
        %v751 = vsub.s32 0, %v750
        %v752 = vrot.slane %v507, %v751
        %v753 = vmul.f32 %v747, %v752
        %754 = vrot.lane.b32.xlu0 %v739, 64
        %v755 = vpop.permute.xlu0 %754
        %v756 = vmul.f32 %v753, %v755
        %v757 = vadd.f32 %v744, %v756
        %758 = vrot.lane.b32.xlu0 %v757, 127
        %v759 = vpop.permute.xlu0 %758
        %760 = vrot.lane.b32.xlu0 %v757, 1
        %v761 = vpop.permute.xlu0 %760
        %v762 = vsel %vm514, 1, 0
        %v763 = vlaneseq
        %v764 = vshrl.u32 %v763, 7
        %v765 = vsub.s32 0, %v764
        %v766 = vrot.slane %v762, %v765
        %vm767 = vcmp.eq.s32.totalorder %v766, 1
        %v768 = vsel %vm767, %v759, %v761
        %769 = vset.pattern.permute.xlu0 5
        %770 = vperm.xlu0 %769, %v392
        %v771 = vpop.permute.xlu0 %770
        %v773 = vmul.f32 %v771, %v757
        %774 = vset.pattern.permute.xlu0 5
        %775 = vperm.xlu0 %774, %v496
        %v776 = vpop.permute.xlu0 %775
        %v778 = vlaneseq
        %v779 = vshrl.u32 %v778, 7
        %v780 = vsub.s32 0, %v779
        %v781 = vrot.slane %v502, %v780
        %v782 = vmul.f32 %v776, %v781
        %v783 = vmul.f32 %v782, %v768
        %v784 = vadd.f32 %v773, %v783
        %785 = vset.pattern.permute.xlu0 23
        %786 = vperm.xlu0 %785, %v392
        %v787 = vpop.permute.xlu0 %786
        %v789 = vmul.f32 %v787, %v784
        %790 = vset.pattern.permute.xlu0 23
        %791 = vperm.xlu0 %790, %v496
        %v792 = vpop.permute.xlu0 %791
        %v794 = vlaneseq
        %v795 = vshrl.u32 %v794, 7
        %v796 = vsub.s32 0, %v795
        %v797 = vrot.slane %v508, %v796
        %v798 = vmul.f32 %v792, %v797
        %799 = vrot.lane.b32.xlu0 %v784, 64
        %v800 = vpop.permute.xlu0 %799
        %v801 = vmul.f32 %v798, %v800
        %v802 = vadd.f32 %v789, %v801
        %803 = vmatprep.subr.mxu0 0.0
        %804 = vmatpush1.msra.mxu0 %v530
        %805 = vmatprep.subr.mxu0 0.0
        %806 = vmatpush1.msra.mxu0 %v529
        %807 = vmatprep.subr.mxu0 0.0
        %808 = vmatpush1.msra.mxu0 %v528
        %809 = vmatprep.subr.mxu0 0.0
        %810 = vmatpush1.msra.mxu0 %v527
        %811 = vmatprep.subr.mxu0 0.0
        %812 = vmatpush1.msra.mxu0 %v526
        %813 = vmatprep.subr.mxu0 0.0
        %814 = vmatpush1.msra.mxu0 %v525
        %815 = vmatprep.subr.mxu0 0.0
        %816 = vmatpush1.msra.mxu0 %v524
        %817 = vmatprep.subr.mxu0 0.0
        %818 = vmatpush1.msra.mxu0 %v523
        %819 = vmatprep.subr.mxu0 0.0
        %820 = vmatpush1.msra.mxu0 %v522
        %821 = vmatprep.subr.mxu0 0.0
        %822 = vmatpush1.msra.mxu0 %v521
        %823 = vmatprep.subr.mxu0 0.0
        %824 = vmatpush1.msra.mxu0 %v520
        %825 = vmatprep.subr.mxu0 0.0
        %826 = vmatpush1.msra.mxu0 %v519
        %827 = vmatprep.subr.mxu0 0.0
        %828 = vmatpush1.msra.mxu0 %v518
        %829 = vmatprep.subr.mxu0 0.0
        %830 = vmatpush1.msra.mxu0 %v517
        %831 = vmatprep.subr.mxu0 0.0
        %832 = vmatpush1.msra.mxu0 %v516
        %833 = vmatprep.subr.mxu0 0.0
        %834 = vmatpush1.msra.mxu0 %v515
        %835 = vmatprep.subr.mxu0 0.0
        %836 = vmatpush2.msra.mxu0 0.0
        %837 = vmatprep.subr.mxu0 0.0
        %838 = vmatpush2.msra.mxu0 0.0
        %839 = vmatprep.subr.mxu0 0.0
        %840 = vmatpush2.msra.mxu0 0.0
        %841 = vmatprep.subr.mxu0 0.0
        %842 = vmatpush2.msra.mxu0 0.0
        %843 = vmatprep.subr.mxu0 0.0
        %844 = vmatpush2.msra.mxu0 0.0
        %845 = vmatprep.subr.mxu0 0.0
        %846 = vmatpush2.msra.mxu0 0.0
        %847 = vmatprep.subr.mxu0 0.0
        %848 = vmatpush2.msra.mxu0 0.0
        %849 = vmatprep.subr.mxu0 0.0
        %850 = vmatpush2.msra.mxu0 0.0
        %851 = vmatprep.subr.mxu0 0.0
        %852 = vmatpush2.msra.mxu0 0.0
        %853 = vmatprep.subr.mxu0 0.0
        %854 = vmatpush2.msra.mxu0 0.0
        %855 = vmatprep.subr.mxu0 0.0
        %856 = vmatpush2.msra.mxu0 0.0
        %857 = vmatprep.subr.mxu0 0.0
        %858 = vmatpush2.msra.mxu0 0.0
        %859 = vmatprep.subr.mxu0 0.0
        %860 = vmatpush2.msra.mxu0 0.0
        %861 = vmatprep.subr.mxu0 0.0
        %862 = vmatpush2.msra.mxu0 0.0
        %863 = vmatprep.subr.mxu0 0.0
        %864 = vmatpush2.msra.mxu0 0.0
        %865 = vmatprep.subr.mxu0 0.0
        %866 = vmatpush2.msra.mxu0 0.0
        %867 = vmatprep.mubr.f32.mxu0 0.0
        %868 = vmatmul.mubr.f32.gmra.mxu0 %v802
        %v869 = vpop.f32.mrf.mxu0
        %v870 = vadd.f32 0.0, %v869
        %v871 = vpop.f32.mrf.mxu0
        %872 = vdwg.mxu0
        %873 = vrot.lane.b32.xlu0 %v870, 96
        %v874 = vpop.permute.xlu0 %873
        %875 = vrot.lane.b32.xlu0 %v870, 32
        %v876 = vpop.permute.xlu0 %875
        %v877 = vsel %vm540, %v874, %v876
        %878 = vset.pattern.permute.xlu0 6
        %879 = vperm.xlu0 %878, %v392
        %v880 = vpop.permute.xlu0 %879
        %v882 = vmul.f32 %v880, %v870
        %883 = vset.pattern.permute.xlu0 6
        %884 = vperm.xlu0 %883, %v496
        %v885 = vpop.permute.xlu0 %884
        %v887 = vmul.f32 %v885, %v556
        %v888 = vmul.f32 %v887, %v877
        %v889 = vadd.f32 %v882, %v888
        %890 = vset.pattern.permute.xlu0 24
        %891 = vperm.xlu0 %890, %v392
        %v892 = vpop.permute.xlu0 %891
        %v894 = vmul.f32 %v892, %v889
        %895 = vset.pattern.permute.xlu0 24
        %896 = vperm.xlu0 %895, %v496
        %v897 = vpop.permute.xlu0 %896
        %v899 = vmul.f32 %v897, %v572
        %900 = vrot.lane.b32.xlu0 %v889, 64
        %v901 = vpop.permute.xlu0 %900
        %v902 = vmul.f32 %v899, %v901
        %v903 = vadd.f32 %v894, %v902
        %904 = vrot.lane.b32.xlu0 %v903, 112
        %v905 = vpop.permute.xlu0 %904
        %906 = vrot.lane.b32.xlu0 %v903, 16
        %v907 = vpop.permute.xlu0 %906
        %v908 = vsel %vm587, %v905, %v907
        %909 = vset.pattern.permute.xlu0 7
        %910 = vperm.xlu0 %909, %v392
        %v911 = vpop.permute.xlu0 %910
        %v913 = vmul.f32 %v911, %v903
        %914 = vset.pattern.permute.xlu0 7
        %915 = vperm.xlu0 %914, %v496
        %v916 = vpop.permute.xlu0 %915
        %v918 = vmul.f32 %v916, %v601
        %v919 = vmul.f32 %v918, %v908
        %v920 = vadd.f32 %v913, %v919
        %921 = vset.pattern.permute.xlu0 25
        %922 = vperm.xlu0 %921, %v392
        %v923 = vpop.permute.xlu0 %922
        %v925 = vmul.f32 %v923, %v920
        %926 = vset.pattern.permute.xlu0 25
        %927 = vperm.xlu0 %926, %v496
        %v928 = vpop.permute.xlu0 %927
        %v930 = vmul.f32 %v928, %v617
        %931 = vrot.lane.b32.xlu0 %v920, 64
        %v932 = vpop.permute.xlu0 %931
        %v933 = vmul.f32 %v930, %v932
        %v934 = vadd.f32 %v925, %v933
        %935 = vrot.lane.b32.xlu0 %v934, 120
        %v936 = vpop.permute.xlu0 %935
        %937 = vrot.lane.b32.xlu0 %v934, 8
        %v938 = vpop.permute.xlu0 %937
        %v939 = vsel %vm632, %v936, %v938
        %940 = vset.pattern.permute.xlu0 8
        %941 = vperm.xlu0 %940, %v392
        %v942 = vpop.permute.xlu0 %941
        %v944 = vmul.f32 %v942, %v934
        %945 = vset.pattern.permute.xlu0 8
        %946 = vperm.xlu0 %945, %v496
        %v947 = vpop.permute.xlu0 %946
        %v949 = vmul.f32 %v947, %v646
        %v950 = vmul.f32 %v949, %v939
        %v951 = vadd.f32 %v944, %v950
        %952 = vset.pattern.permute.xlu0 26
        %953 = vperm.xlu0 %952, %v392
        %v954 = vpop.permute.xlu0 %953
        %v956 = vmul.f32 %v954, %v951
        %957 = vset.pattern.permute.xlu0 26
        %958 = vperm.xlu0 %957, %v496
        %v959 = vpop.permute.xlu0 %958
        %v961 = vmul.f32 %v959, %v662
        %962 = vrot.lane.b32.xlu0 %v951, 64
        %v963 = vpop.permute.xlu0 %962
        %v964 = vmul.f32 %v961, %v963
        %v965 = vadd.f32 %v956, %v964
        %966 = vrot.lane.b32.xlu0 %v965, 124
        %v967 = vpop.permute.xlu0 %966
        %968 = vrot.lane.b32.xlu0 %v965, 4
        %v969 = vpop.permute.xlu0 %968
        %v970 = vsel %vm677, %v967, %v969
        %971 = vset.pattern.permute.xlu0 9
        %972 = vperm.xlu0 %971, %v392
        %v973 = vpop.permute.xlu0 %972
        %v975 = vmul.f32 %v973, %v965
        %976 = vset.pattern.permute.xlu0 9
        %977 = vperm.xlu0 %976, %v496
        %v978 = vpop.permute.xlu0 %977
        %v980 = vmul.f32 %v978, %v691
        %v981 = vmul.f32 %v980, %v970
        %v982 = vadd.f32 %v975, %v981
        %983 = vset.pattern.permute.xlu0 27
        %984 = vperm.xlu0 %983, %v392
        %v985 = vpop.permute.xlu0 %984
        %v987 = vmul.f32 %v985, %v982
        %988 = vset.pattern.permute.xlu0 27
        %989 = vperm.xlu0 %988, %v496
        %v990 = vpop.permute.xlu0 %989
        %v992 = vmul.f32 %v990, %v707
        %993 = vrot.lane.b32.xlu0 %v982, 64
        %v994 = vpop.permute.xlu0 %993
        %v995 = vmul.f32 %v992, %v994
        %v996 = vadd.f32 %v987, %v995
        %997 = vrot.lane.b32.xlu0 %v996, 126
        %v998 = vpop.permute.xlu0 %997
        %999 = vrot.lane.b32.xlu0 %v996, 2
        %v1000 = vpop.permute.xlu0 %999
        %v1001 = vsel %vm722, %v998, %v1000
        %1002 = vset.pattern.permute.xlu0 10
        %1003 = vperm.xlu0 %1002, %v392
        %v1004 = vpop.permute.xlu0 %1003
        %v1006 = vmul.f32 %v1004, %v996
        %1007 = vset.pattern.permute.xlu0 10
        %1008 = vperm.xlu0 %1007, %v496
        %v1009 = vpop.permute.xlu0 %1008
        %v1011 = vmul.f32 %v1009, %v736
        %v1012 = vmul.f32 %v1011, %v1001
        %v1013 = vadd.f32 %v1006, %v1012
        %1014 = vset.pattern.permute.xlu0 28
        %1015 = vperm.xlu0 %1014, %v392
        %v1016 = vpop.permute.xlu0 %1015
        %v1018 = vmul.f32 %v1016, %v1013
        %1019 = vset.pattern.permute.xlu0 28
        %1020 = vperm.xlu0 %1019, %v496
        %v1021 = vpop.permute.xlu0 %1020
        %v1023 = vmul.f32 %v1021, %v752
        %1024 = vrot.lane.b32.xlu0 %v1013, 64
        %v1025 = vpop.permute.xlu0 %1024
        %v1026 = vmul.f32 %v1023, %v1025
        %v1027 = vadd.f32 %v1018, %v1026
        %1028 = vrot.lane.b32.xlu0 %v1027, 127
        %v1029 = vpop.permute.xlu0 %1028
        %1030 = vrot.lane.b32.xlu0 %v1027, 1
        %v1031 = vpop.permute.xlu0 %1030
        %v1032 = vsel %vm767, %v1029, %v1031
        %1033 = vset.pattern.permute.xlu0 11
        %1034 = vperm.xlu0 %1033, %v392
        %v1035 = vpop.permute.xlu0 %1034
        %v1037 = vmul.f32 %v1035, %v1027
        %1038 = vset.pattern.permute.xlu0 11
        %1039 = vperm.xlu0 %1038, %v496
        %v1040 = vpop.permute.xlu0 %1039
        %v1042 = vmul.f32 %v1040, %v781
        %v1043 = vmul.f32 %v1042, %v1032
        %v1044 = vadd.f32 %v1037, %v1043
        %1045 = vset.pattern.permute.xlu0 29
        %1046 = vperm.xlu0 %1045, %v392
        %v1047 = vpop.permute.xlu0 %1046
        %v1049 = vmul.f32 %v1047, %v1044
        %1050 = vset.pattern.permute.xlu0 29
        %1051 = vperm.xlu0 %1050, %v496
        %v1052 = vpop.permute.xlu0 %1051
        %v1054 = vmul.f32 %v1052, %v797
        %1055 = vrot.lane.b32.xlu0 %v1044, 64
        %v1056 = vpop.permute.xlu0 %1055
        %v1057 = vmul.f32 %v1054, %v1056
        %v1058 = vadd.f32 %v1049, %v1057
        %1059 = vmatprep.subr.mxu0 0.0
        %1060 = vmatpush1.msra.mxu0 %v530
        %1061 = vmatprep.subr.mxu0 0.0
        %1062 = vmatpush1.msra.mxu0 %v529
        %1063 = vmatprep.subr.mxu0 0.0
        %1064 = vmatpush1.msra.mxu0 %v528
        %1065 = vmatprep.subr.mxu0 0.0
        %1066 = vmatpush1.msra.mxu0 %v527
        %1067 = vmatprep.subr.mxu0 0.0
        %1068 = vmatpush1.msra.mxu0 %v526
        %1069 = vmatprep.subr.mxu0 0.0
        %1070 = vmatpush1.msra.mxu0 %v525
        %1071 = vmatprep.subr.mxu0 0.0
        %1072 = vmatpush1.msra.mxu0 %v524
        %1073 = vmatprep.subr.mxu0 0.0
        %1074 = vmatpush1.msra.mxu0 %v523
        %1075 = vmatprep.subr.mxu0 0.0
        %1076 = vmatpush1.msra.mxu0 %v522
        %1077 = vmatprep.subr.mxu0 0.0
        %1078 = vmatpush1.msra.mxu0 %v521
        %1079 = vmatprep.subr.mxu0 0.0
        %1080 = vmatpush1.msra.mxu0 %v520
        %1081 = vmatprep.subr.mxu0 0.0
        %1082 = vmatpush1.msra.mxu0 %v519
        %1083 = vmatprep.subr.mxu0 0.0
        %1084 = vmatpush1.msra.mxu0 %v518
        %1085 = vmatprep.subr.mxu0 0.0
        %1086 = vmatpush1.msra.mxu0 %v517
        %1087 = vmatprep.subr.mxu0 0.0
        %1088 = vmatpush1.msra.mxu0 %v516
        %1089 = vmatprep.subr.mxu0 0.0
        %1090 = vmatpush1.msra.mxu0 %v515
        %1091 = vmatprep.subr.mxu0 0.0
        %1092 = vmatpush2.msra.mxu0 0.0
        %1093 = vmatprep.subr.mxu0 0.0
        %1094 = vmatpush2.msra.mxu0 0.0
        %1095 = vmatprep.subr.mxu0 0.0
        %1096 = vmatpush2.msra.mxu0 0.0
        %1097 = vmatprep.subr.mxu0 0.0
        %1098 = vmatpush2.msra.mxu0 0.0
        %1099 = vmatprep.subr.mxu0 0.0
        %1100 = vmatpush2.msra.mxu0 0.0
        %1101 = vmatprep.subr.mxu0 0.0
        %1102 = vmatpush2.msra.mxu0 0.0
        %1103 = vmatprep.subr.mxu0 0.0
        %1104 = vmatpush2.msra.mxu0 0.0
        %1105 = vmatprep.subr.mxu0 0.0
        %1106 = vmatpush2.msra.mxu0 0.0
        %1107 = vmatprep.subr.mxu0 0.0
        %1108 = vmatpush2.msra.mxu0 0.0
        %1109 = vmatprep.subr.mxu0 0.0
        %1110 = vmatpush2.msra.mxu0 0.0
        %1111 = vmatprep.subr.mxu0 0.0
        %1112 = vmatpush2.msra.mxu0 0.0
        %1113 = vmatprep.subr.mxu0 0.0
        %1114 = vmatpush2.msra.mxu0 0.0
        %1115 = vmatprep.subr.mxu0 0.0
        %1116 = vmatpush2.msra.mxu0 0.0
        %1117 = vmatprep.subr.mxu0 0.0
        %1118 = vmatpush2.msra.mxu0 0.0
        %1119 = vmatprep.subr.mxu0 0.0
        %1120 = vmatpush2.msra.mxu0 0.0
        %1121 = vmatprep.subr.mxu0 0.0
        %1122 = vmatpush2.msra.mxu0 0.0
        %1123 = vmatprep.mubr.f32.mxu0 0.0
        %1124 = vmatmul.mubr.f32.gmra.mxu0 %v1058
        %v1125 = vpop.f32.mrf.mxu0
        %v1126 = vadd.f32 0.0, %v1125
        %v1127 = vpop.f32.mrf.mxu0
        %1128 = vdwg.mxu0
        %1129 = vrot.lane.b32.xlu0 %v1126, 96
        %v1130 = vpop.permute.xlu0 %1129
        %1131 = vrot.lane.b32.xlu0 %v1126, 32
        %v1132 = vpop.permute.xlu0 %1131
        %v1133 = vsel %vm540, %v1130, %v1132
        %1134 = vset.pattern.permute.xlu0 12
        %1135 = vperm.xlu0 %1134, %v392
        %v1136 = vpop.permute.xlu0 %1135
        %v1138 = vmul.f32 %v1136, %v1126
        %1139 = vset.pattern.permute.xlu0 12
        %1140 = vperm.xlu0 %1139, %v496
        %v1141 = vpop.permute.xlu0 %1140
        %v1143 = vmul.f32 %v1141, %v556
        %v1144 = vmul.f32 %v1143, %v1133
        %v1145 = vadd.f32 %v1138, %v1144
        %1146 = vset.pattern.permute.xlu0 30
        %1147 = vperm.xlu0 %1146, %v392
        %v1148 = vpop.permute.xlu0 %1147
        %v1150 = vmul.f32 %v1148, %v1145
        %1151 = vset.pattern.permute.xlu0 30
        %1152 = vperm.xlu0 %1151, %v496
        %v1153 = vpop.permute.xlu0 %1152
        %v1155 = vmul.f32 %v1153, %v572
        %1156 = vrot.lane.b32.xlu0 %v1145, 64
        %v1157 = vpop.permute.xlu0 %1156
        %v1158 = vmul.f32 %v1155, %v1157
        %v1159 = vadd.f32 %v1150, %v1158
        %1160 = vrot.lane.b32.xlu0 %v1159, 112
        %v1161 = vpop.permute.xlu0 %1160
        %1162 = vrot.lane.b32.xlu0 %v1159, 16
        %v1163 = vpop.permute.xlu0 %1162
        %v1164 = vsel %vm587, %v1161, %v1163
        %1165 = vset.pattern.permute.xlu0 13
        %1166 = vperm.xlu0 %1165, %v392
        %v1167 = vpop.permute.xlu0 %1166
        %v1169 = vmul.f32 %v1167, %v1159
        %1170 = vset.pattern.permute.xlu0 13
        %1171 = vperm.xlu0 %1170, %v496
        %v1172 = vpop.permute.xlu0 %1171
        %v1174 = vmul.f32 %v1172, %v601
        %v1175 = vmul.f32 %v1174, %v1164
        %v1176 = vadd.f32 %v1169, %v1175
        %1177 = vset.pattern.permute.xlu0 31
        %1178 = vperm.xlu0 %1177, %v392
        %v1179 = vpop.permute.xlu0 %1178
        %v1181 = vmul.f32 %v1179, %v1176
        %1182 = vset.pattern.permute.xlu0 31
        %1183 = vperm.xlu0 %1182, %v496
        %v1184 = vpop.permute.xlu0 %1183
        %v1186 = vmul.f32 %v1184, %v617
        %1187 = vrot.lane.b32.xlu0 %v1176, 64
        %v1188 = vpop.permute.xlu0 %1187
        %v1189 = vmul.f32 %v1186, %v1188
        %v1190 = vadd.f32 %v1181, %v1189
        %1191 = vrot.lane.b32.xlu0 %v1190, 120
        %v1192 = vpop.permute.xlu0 %1191
        %1193 = vrot.lane.b32.xlu0 %v1190, 8
        %v1194 = vpop.permute.xlu0 %1193
        %v1195 = vsel %vm632, %v1192, %v1194
        %1196 = vset.pattern.permute.xlu0 14
        %1197 = vperm.xlu0 %1196, %v392
        %v1198 = vpop.permute.xlu0 %1197
        %v1200 = vmul.f32 %v1198, %v1190
        %1201 = vset.pattern.permute.xlu0 14
        %1202 = vperm.xlu0 %1201, %v496
        %v1203 = vpop.permute.xlu0 %1202
        %v1205 = vmul.f32 %v1203, %v646
        %v1206 = vmul.f32 %v1205, %v1195
        %v1207 = vadd.f32 %v1200, %v1206
        %1208 = vset.pattern.permute.xlu0 32
        %1209 = vperm.xlu0 %1208, %v392
        %v1210 = vpop.permute.xlu0 %1209
        %v1212 = vmul.f32 %v1210, %v1207
        %1213 = vset.pattern.permute.xlu0 32
        %1214 = vperm.xlu0 %1213, %v496
        %v1215 = vpop.permute.xlu0 %1214
        %v1217 = vmul.f32 %v1215, %v662
        %1218 = vrot.lane.b32.xlu0 %v1207, 64
        %v1219 = vpop.permute.xlu0 %1218
        %v1220 = vmul.f32 %v1217, %v1219
        %v1221 = vadd.f32 %v1212, %v1220
        %1222 = vrot.lane.b32.xlu0 %v1221, 124
        %v1223 = vpop.permute.xlu0 %1222
        %1224 = vrot.lane.b32.xlu0 %v1221, 4
        %v1225 = vpop.permute.xlu0 %1224
        %v1226 = vsel %vm677, %v1223, %v1225
        %1227 = vset.pattern.permute.xlu0 15
        %1228 = vperm.xlu0 %1227, %v392
        %v1229 = vpop.permute.xlu0 %1228
        %v1231 = vmul.f32 %v1229, %v1221
        %1232 = vset.pattern.permute.xlu0 15
        %1233 = vperm.xlu0 %1232, %v496
        %v1234 = vpop.permute.xlu0 %1233
        %v1236 = vmul.f32 %v1234, %v691
        %v1237 = vmul.f32 %v1236, %v1226
        %v1238 = vadd.f32 %v1231, %v1237
        %1239 = vset.pattern.permute.xlu0 33
        %1240 = vperm.xlu0 %1239, %v392
        %v1241 = vpop.permute.xlu0 %1240
        %v1243 = vmul.f32 %v1241, %v1238
        %1244 = vset.pattern.permute.xlu0 33
        %1245 = vperm.xlu0 %1244, %v496
        %v1246 = vpop.permute.xlu0 %1245
        %v1248 = vmul.f32 %v1246, %v707
        %1249 = vrot.lane.b32.xlu0 %v1238, 64
        %v1250 = vpop.permute.xlu0 %1249
        %v1251 = vmul.f32 %v1248, %v1250
        %v1252 = vadd.f32 %v1243, %v1251
        %1253 = vrot.lane.b32.xlu0 %v1252, 126
        %v1254 = vpop.permute.xlu0 %1253
        %1255 = vrot.lane.b32.xlu0 %v1252, 2
        %v1256 = vpop.permute.xlu0 %1255
        %v1257 = vsel %vm722, %v1254, %v1256
        %1258 = vset.pattern.permute.xlu0 16
        %1259 = vperm.xlu0 %1258, %v392
        %v1260 = vpop.permute.xlu0 %1259
        %v1262 = vmul.f32 %v1260, %v1252
        %1263 = vset.pattern.permute.xlu0 16
        %1264 = vperm.xlu0 %1263, %v496
        %v1265 = vpop.permute.xlu0 %1264
        %v1267 = vmul.f32 %v1265, %v736
        %v1268 = vmul.f32 %v1267, %v1257
        %v1269 = vadd.f32 %v1262, %v1268
        %1270 = vset.pattern.permute.xlu0 34
        %1271 = vperm.xlu0 %1270, %v392
        %v1272 = vpop.permute.xlu0 %1271
        %v1274 = vmul.f32 %v1272, %v1269
        %1275 = vset.pattern.permute.xlu0 34
        %1276 = vperm.xlu0 %1275, %v496
        %v1277 = vpop.permute.xlu0 %1276
        %v1279 = vmul.f32 %v1277, %v752
        %1280 = vrot.lane.b32.xlu0 %v1269, 64
        %v1281 = vpop.permute.xlu0 %1280
        %v1282 = vmul.f32 %v1279, %v1281
        %v1283 = vadd.f32 %v1274, %v1282
        %1284 = vrot.lane.b32.xlu0 %v1283, 127
        %v1285 = vpop.permute.xlu0 %1284
        %1286 = vrot.lane.b32.xlu0 %v1283, 1
        %v1287 = vpop.permute.xlu0 %1286
        %v1288 = vsel %vm767, %v1285, %v1287
        %1289 = vset.pattern.permute.xlu0 17
        %1290 = vperm.xlu0 %1289, %v392
        %v1291 = vpop.permute.xlu0 %1290
        %v1293 = vmul.f32 %v1291, %v1283
        %1294 = vset.pattern.permute.xlu0 17
        %1295 = vperm.xlu0 %1294, %v496
        %v1296 = vpop.permute.xlu0 %1295
        %v1298 = vmul.f32 %v1296, %v781
        %v1299 = vmul.f32 %v1298, %v1288
        %v1300 = vadd.f32 %v1293, %v1299
        %1301 = vset.pattern.permute.xlu0 35
        %1302 = vperm.xlu0 %1301, %v392
        %v1303 = vpop.permute.xlu0 %1302
        %v1305 = vmul.f32 %v1303, %v1300
        %1306 = vset.pattern.permute.xlu0 35
        %1307 = vperm.xlu0 %1306, %v496
        %v1308 = vpop.permute.xlu0 %1307
        %v1310 = vmul.f32 %v1308, %v797
        %1311 = vrot.lane.b32.xlu0 %v1300, 64
        %v1312 = vpop.permute.xlu0 %1311
        %v1313 = vmul.f32 %v1310, %v1312
        %v1314 = vadd.f32 %v1305, %v1313
        %v1315 = vmul.f32 %v1314, %v1314
        %v1316 = vld [vmem:[#allocation8] sm:$0xff]
        %v1317 = vld [vmem:[#allocation8 + $0x8] sm:$0xff]
        %v1318 = vld [vmem:[#allocation8 + $0x10] sm:$0xff]
        %v1319 = vld [vmem:[#allocation8 + $0x18] sm:$0xff]
        %v1320 = vld [vmem:[#allocation8 + $0x20] sm:$0xff]
        %v1321 = vld [vmem:[#allocation8 + $0x28] sm:$0xff]
        %v1322 = vld [vmem:[#allocation8 + $0x30] sm:$0xff]
        %v1323 = vld [vmem:[#allocation8 + $0x38] sm:$0xff]
        %v1324 = vld [vmem:[#allocation8 + $0x40] sm:$0xff]
        %v1325 = vld [vmem:[#allocation8 + $0x48] sm:$0xff]
        %v1326 = vld [vmem:[#allocation8 + $0x50] sm:$0xff]
        %v1327 = vld [vmem:[#allocation8 + $0x58] sm:$0xff]
        %v1328 = vld [vmem:[#allocation8 + $0x60] sm:$0xff]
        %v1329 = vld [vmem:[#allocation8 + $0x68] sm:$0xff]
        %v1330 = vld [vmem:[#allocation8 + $0x70] sm:$0xff]
        %v1331 = vld [vmem:[#allocation8 + $0x78] sm:$0xff]
        %v1332 = vld [vmem:[%s4] sm:$0x1]
        %v1334 = vlaneseq
        %v1335 = vshrl.u32 %v1334, 7
        %v1336 = vsub.s32 0, %v1335
        %v1337 = vrot.slane %v1332, %v1336
        %1339 = vmatprep.subr.mxu0 0.0
        %1340 = vmatpush1.msra.mxu0 %v1331
        %1341 = vmatprep.subr.mxu0 0.0
        %1342 = vmatpush1.msra.mxu0 %v1330
        %1343 = vmatprep.subr.mxu0 0.0
        %1344 = vmatpush1.msra.mxu0 %v1329
        %1345 = vmatprep.subr.mxu0 0.0
        %1346 = vmatpush1.msra.mxu0 %v1328
        %1347 = vmatprep.subr.mxu0 0.0
        %1348 = vmatpush1.msra.mxu0 %v1327
        %1349 = vmatprep.subr.mxu0 0.0
        %1350 = vmatpush1.msra.mxu0 %v1326
        %1351 = vmatprep.subr.mxu0 0.0
        %1352 = vmatpush1.msra.mxu0 %v1325
        %1353 = vmatprep.subr.mxu0 0.0
        %1354 = vmatpush1.msra.mxu0 %v1324
        %1355 = vmatprep.subr.mxu0 0.0
        %1356 = vmatpush1.msra.mxu0 %v1323
        %1357 = vmatprep.subr.mxu0 0.0
        %1358 = vmatpush1.msra.mxu0 %v1322
        %1359 = vmatprep.subr.mxu0 0.0
        %1360 = vmatpush1.msra.mxu0 %v1321
        %1361 = vmatprep.subr.mxu0 0.0
        %1362 = vmatpush1.msra.mxu0 %v1320
        %1363 = vmatprep.subr.mxu0 0.0
        %1364 = vmatpush1.msra.mxu0 %v1319
        %1365 = vmatprep.subr.mxu0 0.0
        %1366 = vmatpush1.msra.mxu0 %v1318
        %1367 = vmatprep.subr.mxu0 0.0
        %1368 = vmatpush1.msra.mxu0 %v1317
        %1369 = vmatprep.subr.mxu0 0.0
        %1370 = vmatpush1.msra.mxu0 %v1316
        %1371 = vmatprep.subr.mxu0 0.0
        %1372 = vmatpush2.msra.mxu0 0.0
        %1373 = vmatprep.subr.mxu0 0.0
        %1374 = vmatpush2.msra.mxu0 0.0
        %1375 = vmatprep.subr.mxu0 0.0
        %1376 = vmatpush2.msra.mxu0 0.0
        %1377 = vmatprep.subr.mxu0 0.0
        %1378 = vmatpush2.msra.mxu0 0.0
        %1379 = vmatprep.subr.mxu0 0.0
        %1380 = vmatpush2.msra.mxu0 0.0
        %1381 = vmatprep.subr.mxu0 0.0
        %1382 = vmatpush2.msra.mxu0 0.0
        %1383 = vmatprep.subr.mxu0 0.0
        %1384 = vmatpush2.msra.mxu0 0.0
        %1385 = vmatprep.subr.mxu0 0.0
        %1386 = vmatpush2.msra.mxu0 0.0
        %1387 = vmatprep.subr.mxu0 0.0
        %1388 = vmatpush2.msra.mxu0 0.0
        %1389 = vmatprep.subr.mxu0 0.0
        %1390 = vmatpush2.msra.mxu0 0.0
        %1391 = vmatprep.subr.mxu0 0.0
        %1392 = vmatpush2.msra.mxu0 0.0
        %1393 = vmatprep.subr.mxu0 0.0
        %1394 = vmatpush2.msra.mxu0 0.0
        %1395 = vmatprep.subr.mxu0 0.0
        %1396 = vmatpush2.msra.mxu0 0.0
        %1397 = vmatprep.subr.mxu0 0.0
        %1398 = vmatpush2.msra.mxu0 0.0
        %1399 = vmatprep.subr.mxu0 0.0
        %1400 = vmatpush2.msra.mxu0 0.0
        %1401 = vmatprep.subr.mxu0 0.0
        %1402 = vmatpush2.msra.mxu0 0.0
        %1403 = vmatprep.mubr.f32.mxu0 0.0
        %1404 = vmatmul.mubr.f32.gmra.mxu0 %v1315
        %v1405 = vpop.f32.mrf.mxu0
        %v1406 = vadd.f32 %v1337, %v1405
        %v1407 = vpop.f32.mrf.mxu0
        %1408 = vdwg.mxu0
        %1409 = vst [vmem:[%s283] sm:$0xff] %v1406
        %s1410 = sand.u32 %s142, 1
        %s1411 = scalar_lea.sflag [#allocation4], %s1410
        %s1412 = sand.u32 %s142, 1
        %s1413 = smul.addr %s1412, 8
        %s1414 = scalar_lea.vmem [#allocation10], %s1413
        // Predicated region
        $region57: #{tpu_custom_call.1} parent=39 // pred_check
          %p1415 = pneg %p152
        $region58: #{tpu_custom_call.1} parent=39 // pred_check_branch
          %1417 = sbr.rel (%p1415) target = $region60
        $region59: #{tpu_custom_call.1} parent=39 // pred_region
          %s1419 = ssub.s32 128, 128
          %1420 = vsyncadd %s1411, %s1419
          %s1421 = smul.addr %s24, 128
          %s1422 = scalar_lea.hbm %s5, %s1421
          %s1424 = sshll.u32 %s1414, 4
          %s1425 = int_to_ptr.vmem [resolvable:$true] %s1424
          %1427 = dma.vmem_to_hbm [thread:$0]  %s1425, 128, %s1422, %s1411
        $region60: #{tpu_custom_call.1} parent=39 // pred_fallthru
          _
      $region40: #{tpu_custom_call.1} parent=5 // pred_fallthru
        _
      %p1428 = scmp.le.s32.totalorder 2, %s19
      // Predicated region
      $region61: #{tpu_custom_call.1} parent=5 // pred_check
        %p1429 = pneg %p1428
      $region62: #{tpu_custom_call.1} parent=5 // pred_check_branch
        %1431 = sbr.rel (%p1429) target = $region64
      $region63: #{tpu_custom_call.1} parent=5 // pred_region
        %s1432 = ssub.s32 %s19, 2
        // Predicated region
        $region65: #{tpu_custom_call.1} parent=63 // pred_check
          %p1433 = pneg %p158
        $region66: #{tpu_custom_call.1} parent=63 // pred_check_branch
          %1435 = sbr.rel (%p1433) target = $region68
        $region67: #{tpu_custom_call.1} parent=63 // pred_region
          %s1436 = sand.u32 %s143, 1
          %s1437 = scalar_lea.sflag [#allocation4], %s1436
          %s1438 = sand.u32 %s143, 1
          %s1439 = smul.addr %s1438, 8
          %s1440 = scalar_lea.vmem [#allocation10], %s1439
          %1441 = dma.done %s1437, 128
        $region68: #{tpu_custom_call.1} parent=63 // pred_fallthru
          _
      $region64: #{tpu_custom_call.1} parent=5 // pred_fallthru
        _
    $region6: #{tpu_custom_call.1} parent=1 // loop_footer
      %s23 = sadd.s32 1, %s19
    $region7: #{tpu_custom_call.1} parent=1 // loop_footer_branch
      %18 = sbr.rel target = $region3
    $region8: #{tpu_custom_call.1} parent=1 // loop_exit
      _
    %1442 = vsyncpa [#allocation3], 1
    %s1443 = scalar_lea.sflag [#allocation3], 1
    %1444 = vsyncpa %s1443, 1
    %1445 = vsyncpa [#allocation6], 1
    %1446 = vsyncpa [#allocation9], 1
    %1447 = vsyncpa [#allocation4], 1
    %s1448 = scalar_lea.sflag [#allocation4], 1
    %1449 = vsyncpa %s1448, 1

</llo_original>
